<compile_context>
chip_gen: v5e
topology: v5e:2x2
jax: 0.10.0
libtpu: 0.0.40
codegen_flags: <defaults>
</compile_context>

<pallas_src>
import functools

import jax
import jax.numpy as jnp
from jax.experimental import pallas as pl
from jax.experimental.pallas import tpu as pltpu

EPS = 1e-5


def _fill_patch(slab, mask_ref, patch_ref, img_w):
    """im2col: patch[t*Cp + c, q] = slab[c, q + dh*W + dw], zero outside image.

    Each tap: one full-slab pltpu.roll (XLU), one full-width mask multiply
    (the per-tap mask also zeroes the roll wrap-around and cross-image bleed),
    one aligned (Cp, NHW) store into the patch rows.
    """
    cp, nhw = slab.shape
    t = 0
    for dh in (-1, 0, 1):
        for dw in (-1, 0, 1):
            s = dh * img_w + dw
            if s == 0:
                tap = slab                                   # center tap: mask is all ones
            else:
                tap = pltpu.roll(slab, (-s) % nhw, axis=1) * mask_ref[t]
            patch_ref[pl.ds(t * cp, cp), :] = tap.astype(patch_ref.dtype)
            t += 1


def _bn_train(y, gamma, beta, inv_count):
    """Training-mode BatchNorm (biased batch stats over axis 1) in one pass.

    var = E[x^2] - mean^2 is fine in f32 at these column counts; switch to a
    shifted / Welford accumulation when tiling to real ResNet sizes.
    """
    s1 = jnp.sum(y, axis=1, keepdims=True)
    s2 = jnp.sum(y * y, axis=1, keepdims=True)
    mean = s1 * inv_count
    var = s2 * inv_count - mean * mean
    scale = gamma * jax.lax.rsqrt(var + EPS)
    shift = beta - mean * scale
    return y * scale + shift


def _block_kernel(x_ref, mask_ref, w1_ref, g1_ref, be1_ref,
                  w2_ref, g2_ref, be2_ref, o_ref, h_ref, patch_ref, *, img_w):
    cp, nhw = x_ref.shape
    inv_count = 1.0 / float(nhw)

    # --- conv1 (3x3, pad 1): roll-based im2col fill + one bf16 MXU matmul ----
    _fill_patch(x_ref[...], mask_ref, patch_ref, img_w)
    y1 = jnp.dot(w1_ref[...], patch_ref[...], preferred_element_type=jnp.float32)
    # (conv bias omitted: exactly cancelled by the batch-stat BN that follows)

    # --- bn1 + relu fused into one scale/shift; write to a VMEM scratch ref --
    h_ref[...] = jnp.maximum(_bn_train(y1, g1_ref[...], be1_ref[...], inv_count), 0.0)

    # --- conv2 ----------------------------------------------------------------
    _fill_patch(h_ref[...], mask_ref, patch_ref, img_w)
    y2 = jnp.dot(w2_ref[...], patch_ref[...], preferred_element_type=jnp.float32)

    # --- bn2 + residual (re-read x from VMEM) + relu, lane-dense aligned store
    z = _bn_train(y2, g2_ref[...], be2_ref[...], inv_count)
    o_ref[...] = jnp.maximum(z + x_ref[...], 0.0)


def resnet_block_forward(x_nchw, params):
    n, c, h, w = x_nchw.shape
    nhw = n * h * w
    cp = -(-c // 16) * 16          # pad channels to the bf16 sublane tile (16)

    x_k = jnp.transpose(x_nchw, (1, 0, 2, 3)).reshape(c, nhw).astype(jnp.float32)
    x_p = jnp.zeros((cp, nhw), jnp.float32).at[:c].set(x_k)

    # Per-tap zero-padding masks over the flattened (n, h, w) axis, indexed by
    # destination position: (9, 1, NHW) f32 (linear in NHW).
    hh = (jnp.arange(nhw, dtype=jnp.int32) // w) % h
    ww = jnp.arange(nhw, dtype=jnp.int32) % w
    masks = []
    for dh in (-1, 0, 1):
        for dw in (-1, 0, 1):
            valid = (hh + dh >= 0) & (hh + dh < h) & (ww + dw >= 0) & (ww + dw < w)
            masks.append(valid.astype(jnp.float32))
    mask_all = jnp.stack(masks).reshape(9, 1, nhw)

    def as_matrix(wgt):
        # PyTorch OIHW, zero-padded to (cp, cp, 3, 3), -> (cp, 9*cp) bf16 with
        # tap-major columns matching the patch row order (t*cp + cin).
        o, i, kh, kw = wgt.shape
        wp = jnp.zeros((cp, cp, kh, kw), jnp.float32).at[:o, :i].set(
            wgt.astype(jnp.float32))
        return jnp.transpose(wp, (0, 2, 3, 1)).reshape(cp, kh * kw * cp).astype(jnp.bfloat16)

    def col(v):
        # Pad gamma/beta with zeros: padded channels then map to exactly 0.
        return jnp.zeros((cp, 1), jnp.float32).at[:c, 0].set(v.astype(jnp.float32))

    vmem = pl.BlockSpec(memory_space=pltpu.MemorySpace.VMEM)
    kernel = functools.partial(_block_kernel, img_w=w)

    # VMEM budget (bytes): f32 slabs (x, h scratch, out), bf16 patch + weights,
    # masks, BN vectors; 2x headroom, floor/ceiling per-generation sane values.
    budget = (3 * cp * nhw * 4
              + 9 * cp * nhw * 2
              + 9 * nhw * 4
              + 2 * cp * 9 * cp * 2
              + 4 * cp * 4)
    vmem_limit = int(min(100 * 1024 * 1024, max(2 * budget + (4 << 20), 16 << 20)))

    out = pl.pallas_call(
        kernel,
        out_shape=jax.ShapeDtypeStruct((cp, nhw), jnp.float32),
        in_specs=[vmem] * 8,
        out_specs=vmem,
        scratch_shapes=[pltpu.VMEM((cp, nhw), jnp.float32),        # bn1+relu result
                        pltpu.VMEM((9 * cp, nhw), jnp.bfloat16)],  # im2col patch
        compiler_params=pltpu.CompilerParams(vmem_limit_bytes=vmem_limit),
    )(x_p, mask_all,
      as_matrix(params["w1"]), col(params["g1"]), col(params["be1"]),
      as_matrix(params["w2"]), col(params["g2"]), col(params["be2"]))

    return out[:c].reshape(c, n, h, w).transpose(1, 0, 2, 3)


def init_params(key, c):
    # Deterministic init mimicking nn.Conv2d defaults; BN gamma=1, beta=0.
    k1, k2, k3, k4 = jax.random.split(key, 4)
    bound = 1.0 / ((c * 9) ** 0.5)
    return dict(
        w1=jax.random.uniform(k1, (c, c, 3, 3), jnp.float32, -bound, bound),
        b1=jax.random.uniform(k2, (c,), jnp.float32, -bound, bound),
        g1=jnp.ones((c,), jnp.float32), be1=jnp.zeros((c,), jnp.float32),
        w2=jax.random.uniform(k3, (c, c, 3, 3), jnp.float32, -bound, bound),
        b2=jax.random.uniform(k4, (c,), jnp.float32, -bound, bound),
        g2=jnp.ones((c,), jnp.float32), be2=jnp.zeros((c,), jnp.float32),
    )


def block_reference(x, p):
    """Pure-JAX reference of the PyTorch Block forward (training-mode BN)."""
    def conv(y, wgt, b):
        o = jax.lax.conv_general_dilated(
            y, wgt, (1, 1), ((1, 1), (1, 1)),
            dimension_numbers=("NCHW", "OIHW", "NCHW"),
            precision=jax.lax.Precision.HIGHEST)
        return o + b[None, :, None, None]

    def bn(y, g, be):
        m = y.mean(axis=(0, 2, 3), keepdims=True)
        v = ((y - m) ** 2).mean(axis=(0, 2, 3), keepdims=True)
        return (y - m) * jax.lax.rsqrt(v + EPS) * g[None, :, None, None] \
            + be[None, :, None, None]

    h = jax.nn.relu(bn(conv(x, p["w1"], p["b1"]), p["g1"], p["be1"]))
    h = bn(conv(h, p["w2"], p["b2"]), p["g2"], p["be2"])
    return jax.nn.relu(h + x)


if __name__ == "__main__":
    N, C, H, W = 2, 4, 16, 16
    key = jax.random.PRNGKey(0)
    kx, kp = jax.random.split(key)
    x = jax.random.normal(kx, (N, C, H, W), jnp.float32)
    params = init_params(kp, C)

    fwd = jax.jit(resnet_block_forward)
    out = jax.block_until_ready(fwd(x, params))

    ref = jax.block_until_ready(block_reference(x, params))
    err = float(jnp.max(jnp.abs(out - ref)))
    # Tolerance sized for bf16 MXU operands (f32 accumulation) across two convs
    # vs a HIGHEST-precision f32 reference; BN keeps activations at unit scale,
    # so structural bugs would show up as O(1) errors, not O(1e-2).
    if err > 1e-1:
        raise AssertionError(f"Pallas block mismatch vs reference, max abs err={err}")

    print("KERNEL_OK")
</pallas_src>

<mosaic_0001>
module attributes {stable_mosaic.version = 11 : i64} {
  func.func @_block_kernel(%arg0: memref<16x512xf32, #tpu.memory_space<vmem>>, %arg1: memref<9x1x512xf32, #tpu.memory_space<vmem>>, %arg2: memref<16x144xbf16, #tpu.memory_space<vmem>>, %arg3: memref<16x1xf32, #tpu.memory_space<vmem>>, %arg4: memref<16x1xf32, #tpu.memory_space<vmem>>, %arg5: memref<16x144xbf16, #tpu.memory_space<vmem>>, %arg6: memref<16x1xf32, #tpu.memory_space<vmem>>, %arg7: memref<16x1xf32, #tpu.memory_space<vmem>>, %arg8: memref<16x512xf32, #tpu.memory_space<vmem>>, %arg9: memref<16x512xf32, #tpu.memory_space<vmem>>, %arg10: memref<144x512xbf16, #tpu.memory_space<vmem>>) attributes {dimension_semantics = [], scalar_prefetch = 0 : i64, scratch_operands = 2 : i64, tpu.core_type = #tpu.core_type<tc>} {
    %c0 = arith.constant 0 : index
    %c0_0 = arith.constant 0 : index
    %0 = vector.load %arg0[%c0, %c0_0] : memref<16x512xf32, #tpu.memory_space<vmem>>, vector<16x512xf32>
    %c17_i32 = arith.constant 17 : i32
    %1 = tpu.dynamic_rotate %0 by %c17_i32 dim 1 : vector<16x512xf32>, i32 -> vector<16x512xf32>
    %c0_1 = arith.constant 0 : index
    %c0_2 = arith.constant 0 : index
    %c0_3 = arith.constant 0 : index
    %2 = vector.load %arg1[%c0_1, %c0_2, %c0_3] : memref<9x1x512xf32, #tpu.memory_space<vmem>>, vector<1x1x512xf32>
    %3 = vector.shape_cast %2 : vector<1x1x512xf32> to vector<1x512xf32>
    %4 = vector.broadcast %3 : vector<1x512xf32> to vector<16x512xf32>
    %5 = arith.mulf %1, %4 : vector<16x512xf32>
    %6 = arith.truncf %5 : vector<16x512xf32> to vector<16x512xbf16>
    %c0_4 = arith.constant 0 : index
    %c0_5 = arith.constant 0 : index
    %7 = vector.load %arg10[%c0_4, %c0_5] : memref<144x512xbf16, #tpu.memory_space<vmem>>, vector<16x512xbf16>
    tpu.vector_store %arg10[%c0_4, %c0_5], %6 {strides = array<i32>} : memref<144x512xbf16, #tpu.memory_space<vmem>>, vector<16x512xbf16>,
    %c16_i32 = arith.constant 16 : i32
    %8 = tpu.dynamic_rotate %0 by %c16_i32 dim 1 : vector<16x512xf32>, i32 -> vector<16x512xf32>
    %c1 = arith.constant 1 : index
    %c0_6 = arith.constant 0 : index
    %c0_7 = arith.constant 0 : index
    %9 = vector.load %arg1[%c1, %c0_6, %c0_7] : memref<9x1x512xf32, #tpu.memory_space<vmem>>, vector<1x1x512xf32>
    %10 = vector.shape_cast %9 : vector<1x1x512xf32> to vector<1x512xf32>
    %11 = vector.broadcast %10 : vector<1x512xf32> to vector<16x512xf32>
    %12 = arith.mulf %8, %11 : vector<16x512xf32>
    %13 = arith.truncf %12 : vector<16x512xf32> to vector<16x512xbf16>
    %c16 = arith.constant 16 : index
    %c0_8 = arith.constant 0 : index
    %14 = vector.load %arg10[%c16, %c0_8] : memref<144x512xbf16, #tpu.memory_space<vmem>>, vector<16x512xbf16>
    tpu.vector_store %arg10[%c16, %c0_8], %13 {strides = array<i32>} : memref<144x512xbf16, #tpu.memory_space<vmem>>, vector<16x512xbf16>,
    %c15_i32 = arith.constant 15 : i32
    %15 = tpu.dynamic_rotate %0 by %c15_i32 dim 1 : vector<16x512xf32>, i32 -> vector<16x512xf32>
    %c2 = arith.constant 2 : index
    %c0_9 = arith.constant 0 : index
    %c0_10 = arith.constant 0 : index
    %16 = vector.load %arg1[%c2, %c0_9, %c0_10] : memref<9x1x512xf32, #tpu.memory_space<vmem>>, vector<1x1x512xf32>
    %17 = vector.shape_cast %16 : vector<1x1x512xf32> to vector<1x512xf32>
    %18 = vector.broadcast %17 : vector<1x512xf32> to vector<16x512xf32>
    %19 = arith.mulf %15, %18 : vector<16x512xf32>
    %20 = arith.truncf %19 : vector<16x512xf32> to vector<16x512xbf16>
    %c32 = arith.constant 32 : index
    %c0_11 = arith.constant 0 : index
    %21 = vector.load %arg10[%c32, %c0_11] : memref<144x512xbf16, #tpu.memory_space<vmem>>, vector<16x512xbf16>
    tpu.vector_store %arg10[%c32, %c0_11], %20 {strides = array<i32>} : memref<144x512xbf16, #tpu.memory_space<vmem>>, vector<16x512xbf16>,
    %c1_i32 = arith.constant 1 : i32
    %22 = tpu.dynamic_rotate %0 by %c1_i32 dim 1 : vector<16x512xf32>, i32 -> vector<16x512xf32>
    %c3 = arith.constant 3 : index
    %c0_12 = arith.constant 0 : index
    %c0_13 = arith.constant 0 : index
    %23 = vector.load %arg1[%c3, %c0_12, %c0_13] : memref<9x1x512xf32, #tpu.memory_space<vmem>>, vector<1x1x512xf32>
    %24 = vector.shape_cast %23 : vector<1x1x512xf32> to vector<1x512xf32>
    %25 = vector.broadcast %24 : vector<1x512xf32> to vector<16x512xf32>
    %26 = arith.mulf %22, %25 : vector<16x512xf32>
    %27 = arith.truncf %26 : vector<16x512xf32> to vector<16x512xbf16>
    %c48 = arith.constant 48 : index
    %c0_14 = arith.constant 0 : index
    %28 = vector.load %arg10[%c48, %c0_14] : memref<144x512xbf16, #tpu.memory_space<vmem>>, vector<16x512xbf16>
    tpu.vector_store %arg10[%c48, %c0_14], %27 {strides = array<i32>} : memref<144x512xbf16, #tpu.memory_space<vmem>>, vector<16x512xbf16>,
    %29 = arith.truncf %0 : vector<16x512xf32> to vector<16x512xbf16>
    %c64 = arith.constant 64 : index
    %c0_15 = arith.constant 0 : index
    %30 = vector.load %arg10[%c64, %c0_15] : memref<144x512xbf16, #tpu.memory_space<vmem>>, vector<16x512xbf16>
    tpu.vector_store %arg10[%c64, %c0_15], %29 {strides = array<i32>} : memref<144x512xbf16, #tpu.memory_space<vmem>>, vector<16x512xbf16>,
    %c511_i32 = arith.constant 511 : i32
    %31 = tpu.dynamic_rotate %0 by %c511_i32 dim 1 : vector<16x512xf32>, i32 -> vector<16x512xf32>
    %c5 = arith.constant 5 : index
    %c0_16 = arith.constant 0 : index
    %c0_17 = arith.constant 0 : index
    %32 = vector.load %arg1[%c5, %c0_16, %c0_17] : memref<9x1x512xf32, #tpu.memory_space<vmem>>, vector<1x1x512xf32>
    %33 = vector.shape_cast %32 : vector<1x1x512xf32> to vector<1x512xf32>
    %34 = vector.broadcast %33 : vector<1x512xf32> to vector<16x512xf32>
    %35 = arith.mulf %31, %34 : vector<16x512xf32>
    %36 = arith.truncf %35 : vector<16x512xf32> to vector<16x512xbf16>
    %c80 = arith.constant 80 : index
    %c0_18 = arith.constant 0 : index
    %37 = vector.load %arg10[%c80, %c0_18] : memref<144x512xbf16, #tpu.memory_space<vmem>>, vector<16x512xbf16>
    tpu.vector_store %arg10[%c80, %c0_18], %36 {strides = array<i32>} : memref<144x512xbf16, #tpu.memory_space<vmem>>, vector<16x512xbf16>,
    %c497_i32 = arith.constant 497 : i32
    %38 = tpu.dynamic_rotate %0 by %c497_i32 dim 1 : vector<16x512xf32>, i32 -> vector<16x512xf32>
    %c6 = arith.constant 6 : index
    %c0_19 = arith.constant 0 : index
    %c0_20 = arith.constant 0 : index
    %39 = vector.load %arg1[%c6, %c0_19, %c0_20] : memref<9x1x512xf32, #tpu.memory_space<vmem>>, vector<1x1x512xf32>
    %40 = vector.shape_cast %39 : vector<1x1x512xf32> to vector<1x512xf32>
    %41 = vector.broadcast %40 : vector<1x512xf32> to vector<16x512xf32>
    %42 = arith.mulf %38, %41 : vector<16x512xf32>
    %43 = arith.truncf %42 : vector<16x512xf32> to vector<16x512xbf16>
    %c96 = arith.constant 96 : index
    %c0_21 = arith.constant 0 : index
    %44 = vector.load %arg10[%c96, %c0_21] : memref<144x512xbf16, #tpu.memory_space<vmem>>, vector<16x512xbf16>
    tpu.vector_store %arg10[%c96, %c0_21], %43 {strides = array<i32>} : memref<144x512xbf16, #tpu.memory_space<vmem>>, vector<16x512xbf16>,
    %c496_i32 = arith.constant 496 : i32
    %45 = tpu.dynamic_rotate %0 by %c496_i32 dim 1 : vector<16x512xf32>, i32 -> vector<16x512xf32>
    %c7 = arith.constant 7 : index
    %c0_22 = arith.constant 0 : index
    %c0_23 = arith.constant 0 : index
    %46 = vector.load %arg1[%c7, %c0_22, %c0_23] : memref<9x1x512xf32, #tpu.memory_space<vmem>>, vector<1x1x512xf32>
    %47 = vector.shape_cast %46 : vector<1x1x512xf32> to vector<1x512xf32>
    %48 = vector.broadcast %47 : vector<1x512xf32> to vector<16x512xf32>
    %49 = arith.mulf %45, %48 : vector<16x512xf32>
    %50 = arith.truncf %49 : vector<16x512xf32> to vector<16x512xbf16>
    %c112 = arith.constant 112 : index
    %c0_24 = arith.constant 0 : index
    %51 = vector.load %arg10[%c112, %c0_24] : memref<144x512xbf16, #tpu.memory_space<vmem>>, vector<16x512xbf16>
    tpu.vector_store %arg10[%c112, %c0_24], %50 {strides = array<i32>} : memref<144x512xbf16, #tpu.memory_space<vmem>>, vector<16x512xbf16>,
    %c495_i32 = arith.constant 495 : i32
    %52 = tpu.dynamic_rotate %0 by %c495_i32 dim 1 : vector<16x512xf32>, i32 -> vector<16x512xf32>
    %c8 = arith.constant 8 : index
    %c0_25 = arith.constant 0 : index
    %c0_26 = arith.constant 0 : index
    %53 = vector.load %arg1[%c8, %c0_25, %c0_26] : memref<9x1x512xf32, #tpu.memory_space<vmem>>, vector<1x1x512xf32>
    %54 = vector.shape_cast %53 : vector<1x1x512xf32> to vector<1x512xf32>
    %55 = vector.broadcast %54 : vector<1x512xf32> to vector<16x512xf32>
    %56 = arith.mulf %52, %55 : vector<16x512xf32>
    %57 = arith.truncf %56 : vector<16x512xf32> to vector<16x512xbf16>
    %c128 = arith.constant 128 : index
    %c0_27 = arith.constant 0 : index
    %58 = vector.load %arg10[%c128, %c0_27] : memref<144x512xbf16, #tpu.memory_space<vmem>>, vector<16x512xbf16>
    tpu.vector_store %arg10[%c128, %c0_27], %57 {strides = array<i32>} : memref<144x512xbf16, #tpu.memory_space<vmem>>, vector<16x512xbf16>,
    %c0_28 = arith.constant 0 : index
    %c0_29 = arith.constant 0 : index
    %59 = vector.load %arg2[%c0_28, %c0_29] : memref<16x144xbf16, #tpu.memory_space<vmem>>, vector<16x144xbf16>
    %c0_30 = arith.constant 0 : index
    %c0_31 = arith.constant 0 : index
    %60 = vector.load %arg10[%c0_30, %c0_31] : memref<144x512xbf16, #tpu.memory_space<vmem>>, vector<144x512xbf16>
    %cst = arith.constant dense<0.000000e+00> : vector<16x512xf32>
    %61 = tpu.matmul %59, %60, %cst {dimension_numbers = #tpu.dot_dimension_numbers<[1], [0], [0], [1], [0, 0, 1, 1], [], []>} : vector<16x144xbf16>, vector<144x512xbf16>, vector<16x512xf32> -> vector<16x512xf32>
    %c0_32 = arith.constant 0 : index
    %c0_33 = arith.constant 0 : index
    %62 = vector.load %arg3[%c0_32, %c0_33] : memref<16x1xf32, #tpu.memory_space<vmem>>, vector<16x1xf32>
    %c0_34 = arith.constant 0 : index
    %c0_35 = arith.constant 0 : index
    %63 = vector.load %arg4[%c0_34, %c0_35] : memref<16x1xf32, #tpu.memory_space<vmem>>, vector<16x1xf32>
    %cst_36 = arith.constant dense<0.000000e+00> : vector<16xf32>
    %64 = vector.multi_reduction <add>, %61, %cst_36 [1] : vector<16x512xf32> to vector<16xf32>
    %65 = vector.shape_cast %64 : vector<16xf32> to vector<16x1xf32>
    %66 = arith.mulf %61, %61 : vector<16x512xf32>
    %cst_37 = arith.constant dense<0.000000e+00> : vector<16xf32>
    %67 = vector.multi_reduction <add>, %66, %cst_37 [1] : vector<16x512xf32> to vector<16xf32>
    %68 = vector.shape_cast %67 : vector<16xf32> to vector<16x1xf32>
    %cst_38 = arith.constant 0.001953125 : f32
    %69 = vector.broadcast %cst_38 : f32 to vector<16x1xf32>
    %70 = arith.mulf %65, %69 : vector<16x1xf32>
    %cst_39 = arith.constant 0.001953125 : f32
    %71 = vector.broadcast %cst_39 : f32 to vector<16x1xf32>
    %72 = arith.mulf %68, %71 : vector<16x1xf32>
    %73 = arith.mulf %70, %70 : vector<16x1xf32>
    %74 = arith.subf %72, %73 : vector<16x1xf32>
    %cst_40 = arith.constant 9.99999974E-6 : f32
    %75 = vector.broadcast %cst_40 : f32 to vector<16x1xf32>
    %76 = arith.addf %74, %75 : vector<16x1xf32>
    %77 = math.rsqrt %76 : vector<16x1xf32>
    %78 = arith.mulf %62, %77 : vector<16x1xf32>
    %79 = arith.mulf %70, %78 : vector<16x1xf32>
    %80 = arith.subf %63, %79 : vector<16x1xf32>
    %81 = vector.broadcast %78 : vector<16x1xf32> to vector<16x512xf32>
    %82 = arith.mulf %61, %81 : vector<16x512xf32>
    %83 = vector.broadcast %80 : vector<16x1xf32> to vector<16x512xf32>
    %84 = arith.addf %82, %83 : vector<16x512xf32>
    %cst_41 = arith.constant 0.000000e+00 : f32
    %85 = vector.broadcast %cst_41 : f32 to vector<16x512xf32>
    %86 = arith.maximumf %84, %85 : vector<16x512xf32>
    %c0_42 = arith.constant 0 : index
    %c0_43 = arith.constant 0 : index
    %87 = vector.load %arg9[%c0_42, %c0_43] : memref<16x512xf32, #tpu.memory_space<vmem>>, vector<16x512xf32>
    tpu.vector_store %arg9[%c0_42, %c0_43], %86 {strides = array<i32>} : memref<16x512xf32, #tpu.memory_space<vmem>>, vector<16x512xf32>,
    %c0_44 = arith.constant 0 : index
    %c0_45 = arith.constant 0 : index
    %88 = vector.load %arg9[%c0_44, %c0_45] : memref<16x512xf32, #tpu.memory_space<vmem>>, vector<16x512xf32>
    %c17_i32_46 = arith.constant 17 : i32
    %89 = tpu.dynamic_rotate %88 by %c17_i32_46 dim 1 : vector<16x512xf32>, i32 -> vector<16x512xf32>
    %c0_47 = arith.constant 0 : index
    %c0_48 = arith.constant 0 : index
    %c0_49 = arith.constant 0 : index
    %90 = vector.load %arg1[%c0_47, %c0_48, %c0_49] : memref<9x1x512xf32, #tpu.memory_space<vmem>>, vector<1x1x512xf32>
    %91 = vector.shape_cast %90 : vector<1x1x512xf32> to vector<1x512xf32>
    %92 = vector.broadcast %91 : vector<1x512xf32> to vector<16x512xf32>
    %93 = arith.mulf %89, %92 : vector<16x512xf32>
    %94 = arith.truncf %93 : vector<16x512xf32> to vector<16x512xbf16>
    %c0_50 = arith.constant 0 : index
    %c0_51 = arith.constant 0 : index
    %95 = vector.load %arg10[%c0_50, %c0_51] : memref<144x512xbf16, #tpu.memory_space<vmem>>, vector<16x512xbf16>
    tpu.vector_store %arg10[%c0_50, %c0_51], %94 {strides = array<i32>} : memref<144x512xbf16, #tpu.memory_space<vmem>>, vector<16x512xbf16>,
    %c16_i32_52 = arith.constant 16 : i32
    %96 = tpu.dynamic_rotate %88 by %c16_i32_52 dim 1 : vector<16x512xf32>, i32 -> vector<16x512xf32>
    %c1_53 = arith.constant 1 : index
    %c0_54 = arith.constant 0 : index
    %c0_55 = arith.constant 0 : index
    %97 = vector.load %arg1[%c1_53, %c0_54, %c0_55] : memref<9x1x512xf32, #tpu.memory_space<vmem>>, vector<1x1x512xf32>
    %98 = vector.shape_cast %97 : vector<1x1x512xf32> to vector<1x512xf32>
    %99 = vector.broadcast %98 : vector<1x512xf32> to vector<16x512xf32>
    %100 = arith.mulf %96, %99 : vector<16x512xf32>
    %101 = arith.truncf %100 : vector<16x512xf32> to vector<16x512xbf16>
    %c16_56 = arith.constant 16 : index
    %c0_57 = arith.constant 0 : index
    %102 = vector.load %arg10[%c16_56, %c0_57] : memref<144x512xbf16, #tpu.memory_space<vmem>>, vector<16x512xbf16>
    tpu.vector_store %arg10[%c16_56, %c0_57], %101 {strides = array<i32>} : memref<144x512xbf16, #tpu.memory_space<vmem>>, vector<16x512xbf16>,
    %c15_i32_58 = arith.constant 15 : i32
    %103 = tpu.dynamic_rotate %88 by %c15_i32_58 dim 1 : vector<16x512xf32>, i32 -> vector<16x512xf32>
    %c2_59 = arith.constant 2 : index
    %c0_60 = arith.constant 0 : index
    %c0_61 = arith.constant 0 : index
    %104 = vector.load %arg1[%c2_59, %c0_60, %c0_61] : memref<9x1x512xf32, #tpu.memory_space<vmem>>, vector<1x1x512xf32>
    %105 = vector.shape_cast %104 : vector<1x1x512xf32> to vector<1x512xf32>
    %106 = vector.broadcast %105 : vector<1x512xf32> to vector<16x512xf32>
    %107 = arith.mulf %103, %106 : vector<16x512xf32>
    %108 = arith.truncf %107 : vector<16x512xf32> to vector<16x512xbf16>
    %c32_62 = arith.constant 32 : index
    %c0_63 = arith.constant 0 : index
    %109 = vector.load %arg10[%c32_62, %c0_63] : memref<144x512xbf16, #tpu.memory_space<vmem>>, vector<16x512xbf16>
    tpu.vector_store %arg10[%c32_62, %c0_63], %108 {strides = array<i32>} : memref<144x512xbf16, #tpu.memory_space<vmem>>, vector<16x512xbf16>,
    %c1_i32_64 = arith.constant 1 : i32
    %110 = tpu.dynamic_rotate %88 by %c1_i32_64 dim 1 : vector<16x512xf32>, i32 -> vector<16x512xf32>
    %c3_65 = arith.constant 3 : index
    %c0_66 = arith.constant 0 : index
    %c0_67 = arith.constant 0 : index
    %111 = vector.load %arg1[%c3_65, %c0_66, %c0_67] : memref<9x1x512xf32, #tpu.memory_space<vmem>>, vector<1x1x512xf32>
    %112 = vector.shape_cast %111 : vector<1x1x512xf32> to vector<1x512xf32>
    %113 = vector.broadcast %112 : vector<1x512xf32> to vector<16x512xf32>
    %114 = arith.mulf %110, %113 : vector<16x512xf32>
    %115 = arith.truncf %114 : vector<16x512xf32> to vector<16x512xbf16>
    %c48_68 = arith.constant 48 : index
    %c0_69 = arith.constant 0 : index
    %116 = vector.load %arg10[%c48_68, %c0_69] : memref<144x512xbf16, #tpu.memory_space<vmem>>, vector<16x512xbf16>
    tpu.vector_store %arg10[%c48_68, %c0_69], %115 {strides = array<i32>} : memref<144x512xbf16, #tpu.memory_space<vmem>>, vector<16x512xbf16>,
    %117 = arith.truncf %88 : vector<16x512xf32> to vector<16x512xbf16>
    %c64_70 = arith.constant 64 : index
    %c0_71 = arith.constant 0 : index
    %118 = vector.load %arg10[%c64_70, %c0_71] : memref<144x512xbf16, #tpu.memory_space<vmem>>, vector<16x512xbf16>
    tpu.vector_store %arg10[%c64_70, %c0_71], %117 {strides = array<i32>} : memref<144x512xbf16, #tpu.memory_space<vmem>>, vector<16x512xbf16>,
    %c511_i32_72 = arith.constant 511 : i32
    %119 = tpu.dynamic_rotate %88 by %c511_i32_72 dim 1 : vector<16x512xf32>, i32 -> vector<16x512xf32>
    %c5_73 = arith.constant 5 : index
    %c0_74 = arith.constant 0 : index
    %c0_75 = arith.constant 0 : index
    %120 = vector.load %arg1[%c5_73, %c0_74, %c0_75] : memref<9x1x512xf32, #tpu.memory_space<vmem>>, vector<1x1x512xf32>
    %121 = vector.shape_cast %120 : vector<1x1x512xf32> to vector<1x512xf32>
    %122 = vector.broadcast %121 : vector<1x512xf32> to vector<16x512xf32>
    %123 = arith.mulf %119, %122 : vector<16x512xf32>
    %124 = arith.truncf %123 : vector<16x512xf32> to vector<16x512xbf16>
    %c80_76 = arith.constant 80 : index
    %c0_77 = arith.constant 0 : index
    %125 = vector.load %arg10[%c80_76, %c0_77] : memref<144x512xbf16, #tpu.memory_space<vmem>>, vector<16x512xbf16>
    tpu.vector_store %arg10[%c80_76, %c0_77], %124 {strides = array<i32>} : memref<144x512xbf16, #tpu.memory_space<vmem>>, vector<16x512xbf16>,
    %c497_i32_78 = arith.constant 497 : i32
    %126 = tpu.dynamic_rotate %88 by %c497_i32_78 dim 1 : vector<16x512xf32>, i32 -> vector<16x512xf32>
    %c6_79 = arith.constant 6 : index
    %c0_80 = arith.constant 0 : index
    %c0_81 = arith.constant 0 : index
    %127 = vector.load %arg1[%c6_79, %c0_80, %c0_81] : memref<9x1x512xf32, #tpu.memory_space<vmem>>, vector<1x1x512xf32>
    %128 = vector.shape_cast %127 : vector<1x1x512xf32> to vector<1x512xf32>
    %129 = vector.broadcast %128 : vector<1x512xf32> to vector<16x512xf32>
    %130 = arith.mulf %126, %129 : vector<16x512xf32>
    %131 = arith.truncf %130 : vector<16x512xf32> to vector<16x512xbf16>
    %c96_82 = arith.constant 96 : index
    %c0_83 = arith.constant 0 : index
    %132 = vector.load %arg10[%c96_82, %c0_83] : memref<144x512xbf16, #tpu.memory_space<vmem>>, vector<16x512xbf16>
    tpu.vector_store %arg10[%c96_82, %c0_83], %131 {strides = array<i32>} : memref<144x512xbf16, #tpu.memory_space<vmem>>, vector<16x512xbf16>,
    %c496_i32_84 = arith.constant 496 : i32
    %133 = tpu.dynamic_rotate %88 by %c496_i32_84 dim 1 : vector<16x512xf32>, i32 -> vector<16x512xf32>
    %c7_85 = arith.constant 7 : index
    %c0_86 = arith.constant 0 : index
    %c0_87 = arith.constant 0 : index
    %134 = vector.load %arg1[%c7_85, %c0_86, %c0_87] : memref<9x1x512xf32, #tpu.memory_space<vmem>>, vector<1x1x512xf32>
    %135 = vector.shape_cast %134 : vector<1x1x512xf32> to vector<1x512xf32>
    %136 = vector.broadcast %135 : vector<1x512xf32> to vector<16x512xf32>
    %137 = arith.mulf %133, %136 : vector<16x512xf32>
    %138 = arith.truncf %137 : vector<16x512xf32> to vector<16x512xbf16>
    %c112_88 = arith.constant 112 : index
    %c0_89 = arith.constant 0 : index
    %139 = vector.load %arg10[%c112_88, %c0_89] : memref<144x512xbf16, #tpu.memory_space<vmem>>, vector<16x512xbf16>
    tpu.vector_store %arg10[%c112_88, %c0_89], %138 {strides = array<i32>} : memref<144x512xbf16, #tpu.memory_space<vmem>>, vector<16x512xbf16>,
    %c495_i32_90 = arith.constant 495 : i32
    %140 = tpu.dynamic_rotate %88 by %c495_i32_90 dim 1 : vector<16x512xf32>, i32 -> vector<16x512xf32>
    %c8_91 = arith.constant 8 : index
    %c0_92 = arith.constant 0 : index
    %c0_93 = arith.constant 0 : index
    %141 = vector.load %arg1[%c8_91, %c0_92, %c0_93] : memref<9x1x512xf32, #tpu.memory_space<vmem>>, vector<1x1x512xf32>
    %142 = vector.shape_cast %141 : vector<1x1x512xf32> to vector<1x512xf32>
    %143 = vector.broadcast %142 : vector<1x512xf32> to vector<16x512xf32>
    %144 = arith.mulf %140, %143 : vector<16x512xf32>
    %145 = arith.truncf %144 : vector<16x512xf32> to vector<16x512xbf16>
    %c128_94 = arith.constant 128 : index
    %c0_95 = arith.constant 0 : index
    %146 = vector.load %arg10[%c128_94, %c0_95] : memref<144x512xbf16, #tpu.memory_space<vmem>>, vector<16x512xbf16>
    tpu.vector_store %arg10[%c128_94, %c0_95], %145 {strides = array<i32>} : memref<144x512xbf16, #tpu.memory_space<vmem>>, vector<16x512xbf16>,
    %c0_96 = arith.constant 0 : index
    %c0_97 = arith.constant 0 : index
    %147 = vector.load %arg5[%c0_96, %c0_97] : memref<16x144xbf16, #tpu.memory_space<vmem>>, vector<16x144xbf16>
    %c0_98 = arith.constant 0 : index
    %c0_99 = arith.constant 0 : index
    %148 = vector.load %arg10[%c0_98, %c0_99] : memref<144x512xbf16, #tpu.memory_space<vmem>>, vector<144x512xbf16>
    %cst_100 = arith.constant dense<0.000000e+00> : vector<16x512xf32>
    %149 = tpu.matmul %147, %148, %cst_100 {dimension_numbers = #tpu.dot_dimension_numbers<[1], [0], [0], [1], [0, 0, 1, 1], [], []>} : vector<16x144xbf16>, vector<144x512xbf16>, vector<16x512xf32> -> vector<16x512xf32>
    %c0_101 = arith.constant 0 : index
    %c0_102 = arith.constant 0 : index
    %150 = vector.load %arg6[%c0_101, %c0_102] : memref<16x1xf32, #tpu.memory_space<vmem>>, vector<16x1xf32>
    %c0_103 = arith.constant 0 : index
    %c0_104 = arith.constant 0 : index
    %151 = vector.load %arg7[%c0_103, %c0_104] : memref<16x1xf32, #tpu.memory_space<vmem>>, vector<16x1xf32>
    %cst_105 = arith.constant dense<0.000000e+00> : vector<16xf32>
    %152 = vector.multi_reduction <add>, %149, %cst_105 [1] : vector<16x512xf32> to vector<16xf32>
    %153 = vector.shape_cast %152 : vector<16xf32> to vector<16x1xf32>
    %154 = arith.mulf %149, %149 : vector<16x512xf32>
    %cst_106 = arith.constant dense<0.000000e+00> : vector<16xf32>
    %155 = vector.multi_reduction <add>, %154, %cst_106 [1] : vector<16x512xf32> to vector<16xf32>
    %156 = vector.shape_cast %155 : vector<16xf32> to vector<16x1xf32>
    %cst_107 = arith.constant 0.001953125 : f32
    %157 = vector.broadcast %cst_107 : f32 to vector<16x1xf32>
    %158 = arith.mulf %153, %157 : vector<16x1xf32>
    %cst_108 = arith.constant 0.001953125 : f32
    %159 = vector.broadcast %cst_108 : f32 to vector<16x1xf32>
    %160 = arith.mulf %156, %159 : vector<16x1xf32>
    %161 = arith.mulf %158, %158 : vector<16x1xf32>
    %162 = arith.subf %160, %161 : vector<16x1xf32>
    %cst_109 = arith.constant 9.99999974E-6 : f32
    %163 = vector.broadcast %cst_109 : f32 to vector<16x1xf32>
    %164 = arith.addf %162, %163 : vector<16x1xf32>
    %165 = math.rsqrt %164 : vector<16x1xf32>
    %166 = arith.mulf %150, %165 : vector<16x1xf32>
    %167 = arith.mulf %158, %166 : vector<16x1xf32>
    %168 = arith.subf %151, %167 : vector<16x1xf32>
    %169 = vector.broadcast %166 : vector<16x1xf32> to vector<16x512xf32>
    %170 = arith.mulf %149, %169 : vector<16x512xf32>
    %171 = vector.broadcast %168 : vector<16x1xf32> to vector<16x512xf32>
    %172 = arith.addf %170, %171 : vector<16x512xf32>
    %c0_110 = arith.constant 0 : index
    %c0_111 = arith.constant 0 : index
    %173 = vector.load %arg0[%c0_110, %c0_111] : memref<16x512xf32, #tpu.memory_space<vmem>>, vector<16x512xf32>
    %174 = arith.addf %172, %173 : vector<16x512xf32>
    %cst_112 = arith.constant 0.000000e+00 : f32
    %175 = vector.broadcast %cst_112 : f32 to vector<16x512xf32>
    %176 = arith.maximumf %174, %175 : vector<16x512xf32>
    %c0_113 = arith.constant 0 : index
    %c0_114 = arith.constant 0 : index
    %177 = vector.load %arg8[%c0_113, %c0_114] : memref<16x512xf32, #tpu.memory_space<vmem>>, vector<16x512xf32>
    tpu.vector_store %arg8[%c0_113, %c0_114], %176 {strides = array<i32>} : memref<16x512xf32, #tpu.memory_space<vmem>>, vector<16x512xf32>,
    return
  }
}

</mosaic_0001>

<llo_original>
// kernel: resnet_block_forward.1
$region0: #{resnet_block_forward.1}
  #allocation0 [shape = 'u32[]', space=smem, size = 0x4, offset = 0x4, fixed_abs, tag = 'smem constant byte address 0x4 - core index']
  #allocation1 [shape = 'u32[72,128]{1,0:T(1,128)}', space=vmem, size = 0x9000, scoped, tag = 'internal scratch']
  #allocation2 [shape = 'f32[16,512]{1,0:T(8,128)}', space=vmem, size = 0x8000, scoped, tag = 'scratch operand']
  #allocation3 [shape = 'bf16[144,512]{1,0:T(8,128)(2,1)}', space=vmem, size = 0x24000, scoped, tag = 'scratch operand']
  %s0 = inlined_call_operand.vmem [shape: f32[16,512], index: 0, kind: input, shape index: {}]
  %s1 = inlined_call_operand.vmem [shape: f32[9,1,512], index: 1, kind: input, shape index: {}]
  %s2 = inlined_call_operand.vmem [shape: bf16[16,144], index: 2, kind: input, shape index: {}]
  %s3 = inlined_call_operand.vmem [shape: f32[16,1], index: 3, kind: input, shape index: {}]
  %s4 = inlined_call_operand.vmem [shape: f32[16,1], index: 4, kind: input, shape index: {}]
  %s5 = inlined_call_operand.vmem [shape: bf16[16,144], index: 5, kind: input, shape index: {}]
  %s6 = inlined_call_operand.vmem [shape: f32[16,1], index: 6, kind: input, shape index: {}]
  %s7 = inlined_call_operand.vmem [shape: f32[16,1], index: 7, kind: input, shape index: {}]
  %s8 = inlined_call_operand.vmem [shape: f32[16,512], index: 8, kind: output, shape index: {}]
  %s9 = sld [smem:[#allocation0]]
  $region42: #{resnet_block_forward.1} parent=0
    _
  %s11 = ssub.s32 1, %s9
  %s12 = scalar_select 0, %s11, %s9
  // Predicated region
  $region2: #{resnet_block_forward.1} parent=0 // pred_check
    _
  $region3: #{resnet_block_forward.1} parent=0 // pred_check_branch
    %14 = sbr.rel (0) target = $region5
  $region4: #{resnet_block_forward.1} parent=0 // pred_region
    _
  $region5: #{resnet_block_forward.1} parent=0 // pred_fallthru
    _
  // Predicated region
  $region6: #{resnet_block_forward.1} parent=0 // pred_check
    _
  $region7: #{resnet_block_forward.1} parent=0 // pred_check_branch
    %16 = sbr.rel (0) target = $region9
  $region8: #{resnet_block_forward.1} parent=0 // pred_region
    _
  $region9: #{resnet_block_forward.1} parent=0 // pred_fallthru
    _
  // Predicated region
  $region10: #{resnet_block_forward.1} parent=0 // pred_check
    _
  $region11: #{resnet_block_forward.1} parent=0 // pred_check_branch
    %18 = sbr.rel (0) target = $region13
  $region12: #{resnet_block_forward.1} parent=0 // pred_region
    _
  $region13: #{resnet_block_forward.1} parent=0 // pred_fallthru
    _
  // Predicated region
  $region14: #{resnet_block_forward.1} parent=0 // pred_check
    _
  $region15: #{resnet_block_forward.1} parent=0 // pred_check_branch
    %20 = sbr.rel (0) target = $region17
  $region16: #{resnet_block_forward.1} parent=0 // pred_region
    _
  $region17: #{resnet_block_forward.1} parent=0 // pred_fallthru
    _
  // Predicated region
  $region18: #{resnet_block_forward.1} parent=0 // pred_check
    _
  $region19: #{resnet_block_forward.1} parent=0 // pred_check_branch
    %22 = sbr.rel (0) target = $region21
  $region20: #{resnet_block_forward.1} parent=0 // pred_region
    _
  $region21: #{resnet_block_forward.1} parent=0 // pred_fallthru
    _
  // Predicated region
  $region22: #{resnet_block_forward.1} parent=0 // pred_check
    _
  $region23: #{resnet_block_forward.1} parent=0 // pred_check_branch
    %24 = sbr.rel (0) target = $region25
  $region24: #{resnet_block_forward.1} parent=0 // pred_region
    _
  $region25: #{resnet_block_forward.1} parent=0 // pred_fallthru
    _
  // Predicated region
  $region26: #{resnet_block_forward.1} parent=0 // pred_check
    _
  $region27: #{resnet_block_forward.1} parent=0 // pred_check_branch
    %26 = sbr.rel (0) target = $region29
  $region28: #{resnet_block_forward.1} parent=0 // pred_region
    _
  $region29: #{resnet_block_forward.1} parent=0 // pred_fallthru
    _
  // Predicated region
  $region30: #{resnet_block_forward.1} parent=0 // pred_check
    _
  $region31: #{resnet_block_forward.1} parent=0 // pred_check_branch
    %28 = sbr.rel (0) target = $region33
  $region32: #{resnet_block_forward.1} parent=0 // pred_region
    _
  $region33: #{resnet_block_forward.1} parent=0 // pred_fallthru
    _
  %v30 = vld [vmem:[%s0] sm:$0xff]
  %v31 = vld [vmem:[%s0 + $0x8] sm:$0xff]
  %v32 = vld [vmem:[%s0 + $0x10] sm:$0xff]
  %v33 = vld [vmem:[%s0 + $0x18] sm:$0xff]
  %v34 = vld [vmem:[%s0 + $0x20] sm:$0xff]
  %v35 = vld [vmem:[%s0 + $0x28] sm:$0xff]
  %v36 = vld [vmem:[%s0 + $0x30] sm:$0xff]
  %v37 = vld [vmem:[%s0 + $0x38] sm:$0xff]
  %38 = vrot.lane.b32.xlu0 %v30, 17
  %v39 = vpop.permute.xlu0 %38
  %40 = vrot.lane.b32.xlu0 %v34, 17
  %v41 = vpop.permute.xlu0 %40
  %42 = vrot.lane.b32.xlu0 %v31, 17
  %v43 = vpop.permute.xlu0 %42
  %44 = vrot.lane.b32.xlu0 %v35, 17
  %v45 = vpop.permute.xlu0 %44
  %46 = vrot.lane.b32.xlu0 %v32, 17
  %v47 = vpop.permute.xlu0 %46
  %48 = vrot.lane.b32.xlu0 %v36, 17
  %v49 = vpop.permute.xlu0 %48
  %50 = vrot.lane.b32.xlu0 %v33, 17
  %v51 = vpop.permute.xlu0 %50
  %52 = vrot.lane.b32.xlu0 %v37, 17
  %v53 = vpop.permute.xlu0 %52
  %v54 = vlaneseq
  %v55 = vand.u32 %v54, 127
  %vm56 = vcmp.lt.s32.totalorder %v55, 17
  %v57 = vsel %vm56, %v47, %v51
  %v58 = vsel %vm56, %v49, %v53
  %v59 = vsel %vm56, %v43, %v47
  %v60 = vsel %vm56, %v45, %v49
  %v61 = vsel %vm56, %v39, %v43
  %v62 = vsel %vm56, %v41, %v45
  %v63 = vsel %vm56, %v51, %v39
  %v64 = vsel %vm56, %v53, %v41
  %v65 = vld [vmem:[%s1] sm:$0xf]
  %v67 = vperm.slane %v65, 0
  %v68 = vperm.slane %v65, 1
  %v69 = vperm.slane %v65, 2
  %v70 = vperm.slane %v65, 3
  %v75 = vmul.f32 %v63, %v67
  %v76 = vmul.f32 %v61, %v68
  %v77 = vmul.f32 %v59, %v69
  %v78 = vmul.f32 %v57, %v70
  %v79 = vmul.f32 %v64, %v67
  %v80 = vmul.f32 %v62, %v68
  %v81 = vmul.f32 %v60, %v69
  %v82 = vmul.f32 %v58, %v70
  %v83 = vpack.c.bf16 %v76, %v75
  %v84 = vpack.c.bf16 %v78, %v77
  %v85 = vpack.c.bf16 %v80, %v79
  %v86 = vpack.c.bf16 %v82, %v81
  %87 = vst [vmem:[#allocation3] sm:$0xff] %v83
  %88 = vst [vmem:[#allocation3 + $0x8] sm:$0xff] %v84
  %89 = vst [vmem:[#allocation3 + $0x10] sm:$0xff] %v85
  %90 = vst [vmem:[#allocation3 + $0x18] sm:$0xff] %v86
  %91 = vrot.lane.b32.xlu0 %v30, 16
  %v92 = vpop.permute.xlu0 %91
  %93 = vrot.lane.b32.xlu0 %v34, 16
  %v94 = vpop.permute.xlu0 %93
  %95 = vrot.lane.b32.xlu0 %v31, 16
  %v96 = vpop.permute.xlu0 %95
  %97 = vrot.lane.b32.xlu0 %v35, 16
  %v98 = vpop.permute.xlu0 %97
  %99 = vrot.lane.b32.xlu0 %v32, 16
  %v100 = vpop.permute.xlu0 %99
  %101 = vrot.lane.b32.xlu0 %v36, 16
  %v102 = vpop.permute.xlu0 %101
  %103 = vrot.lane.b32.xlu0 %v33, 16
  %v104 = vpop.permute.xlu0 %103
  %105 = vrot.lane.b32.xlu0 %v37, 16
  %v106 = vpop.permute.xlu0 %105
  %vm107 = vcmp.lt.s32.totalorder %v55, 16
  %v108 = vsel %vm107, %v100, %v104
  %v109 = vsel %vm107, %v102, %v106
  %v110 = vsel %vm107, %v96, %v100
  %v111 = vsel %vm107, %v98, %v102
  %v112 = vsel %vm107, %v92, %v96
  %v113 = vsel %vm107, %v94, %v98
  %v114 = vsel %vm107, %v104, %v92
  %v115 = vsel %vm107, %v106, %v94
  %s116 = scalar_lea.vmem %s1, 4
  %v117 = vld [vmem:[%s116] sm:$0xf]
  %v119 = vperm.slane %v117, 0
  %v120 = vperm.slane %v117, 1
  %v121 = vperm.slane %v117, 2
  %v122 = vperm.slane %v117, 3
  %v127 = vmul.f32 %v114, %v119
  %v128 = vmul.f32 %v112, %v120
  %v129 = vmul.f32 %v110, %v121
  %v130 = vmul.f32 %v108, %v122
  %v131 = vmul.f32 %v115, %v119
  %v132 = vmul.f32 %v113, %v120
  %v133 = vmul.f32 %v111, %v121
  %v134 = vmul.f32 %v109, %v122
  %v135 = vpack.c.bf16 %v128, %v127
  %v136 = vpack.c.bf16 %v130, %v129
  %v137 = vpack.c.bf16 %v132, %v131
  %v138 = vpack.c.bf16 %v134, %v133
  %139 = vst [vmem:[#allocation3 + $0x20] sm:$0xff] %v135
  %140 = vst [vmem:[#allocation3 + $0x28] sm:$0xff] %v136
  %141 = vst [vmem:[#allocation3 + $0x30] sm:$0xff] %v137
  %142 = vst [vmem:[#allocation3 + $0x38] sm:$0xff] %v138
  %143 = vrot.lane.b32.xlu0 %v30, 15
  %v144 = vpop.permute.xlu0 %143
  %145 = vrot.lane.b32.xlu0 %v34, 15
  %v146 = vpop.permute.xlu0 %145
  %147 = vrot.lane.b32.xlu0 %v31, 15
  %v148 = vpop.permute.xlu0 %147
  %149 = vrot.lane.b32.xlu0 %v35, 15
  %v150 = vpop.permute.xlu0 %149
  %151 = vrot.lane.b32.xlu0 %v32, 15
  %v152 = vpop.permute.xlu0 %151
  %153 = vrot.lane.b32.xlu0 %v36, 15
  %v154 = vpop.permute.xlu0 %153
  %155 = vrot.lane.b32.xlu0 %v33, 15
  %v156 = vpop.permute.xlu0 %155
  %157 = vrot.lane.b32.xlu0 %v37, 15
  %v158 = vpop.permute.xlu0 %157
  %vm159 = vcmp.lt.s32.totalorder %v55, 15
  %v160 = vsel %vm159, %v152, %v156
  %v161 = vsel %vm159, %v154, %v158
  %v162 = vsel %vm159, %v148, %v152
  %v163 = vsel %vm159, %v150, %v154
  %v164 = vsel %vm159, %v144, %v148
  %v165 = vsel %vm159, %v146, %v150
  %v166 = vsel %vm159, %v156, %v144
  %v167 = vsel %vm159, %v158, %v146
  %s168 = scalar_lea.vmem %s1, 8
  %v169 = vld [vmem:[%s168] sm:$0xf]
  %v171 = vperm.slane %v169, 0
  %v172 = vperm.slane %v169, 1
  %v173 = vperm.slane %v169, 2
  %v174 = vperm.slane %v169, 3
  %v179 = vmul.f32 %v166, %v171
  %v180 = vmul.f32 %v164, %v172
  %v181 = vmul.f32 %v162, %v173
  %v182 = vmul.f32 %v160, %v174
  %v183 = vmul.f32 %v167, %v171
  %v184 = vmul.f32 %v165, %v172
  %v185 = vmul.f32 %v163, %v173
  %v186 = vmul.f32 %v161, %v174
  %v187 = vpack.c.bf16 %v180, %v179
  %v188 = vpack.c.bf16 %v182, %v181
  %v189 = vpack.c.bf16 %v184, %v183
  %v190 = vpack.c.bf16 %v186, %v185
  %191 = vst [vmem:[#allocation3 + $0x40] sm:$0xff] %v187
  %192 = vst [vmem:[#allocation3 + $0x48] sm:$0xff] %v188
  %193 = vst [vmem:[#allocation3 + $0x50] sm:$0xff] %v189
  %194 = vst [vmem:[#allocation3 + $0x58] sm:$0xff] %v190
  %195 = vrot.lane.b32.xlu0 %v30, 1
  %v196 = vpop.permute.xlu0 %195
  %197 = vrot.lane.b32.xlu0 %v34, 1
  %v198 = vpop.permute.xlu0 %197
  %199 = vrot.lane.b32.xlu0 %v31, 1
  %v200 = vpop.permute.xlu0 %199
  %201 = vrot.lane.b32.xlu0 %v35, 1
  %v202 = vpop.permute.xlu0 %201
  %203 = vrot.lane.b32.xlu0 %v32, 1
  %v204 = vpop.permute.xlu0 %203
  %205 = vrot.lane.b32.xlu0 %v36, 1
  %v206 = vpop.permute.xlu0 %205
  %207 = vrot.lane.b32.xlu0 %v33, 1
  %v208 = vpop.permute.xlu0 %207
  %209 = vrot.lane.b32.xlu0 %v37, 1
  %v210 = vpop.permute.xlu0 %209
  %vm211 = vcmp.lt.s32.totalorder %v55, 1
  %v212 = vsel %vm211, %v204, %v208
  %v213 = vsel %vm211, %v206, %v210
  %v214 = vsel %vm211, %v200, %v204
  %v215 = vsel %vm211, %v202, %v206
  %v216 = vsel %vm211, %v196, %v200
  %v217 = vsel %vm211, %v198, %v202
  %v218 = vsel %vm211, %v208, %v196
  %v219 = vsel %vm211, %v210, %v198
  %s220 = scalar_lea.vmem %s1, 12
  %v221 = vld [vmem:[%s220] sm:$0xf]
  %v223 = vperm.slane %v221, 0
  %v224 = vperm.slane %v221, 1
  %v225 = vperm.slane %v221, 2
  %v226 = vperm.slane %v221, 3
  %v231 = vmul.f32 %v218, %v223
  %v232 = vmul.f32 %v216, %v224
  %v233 = vmul.f32 %v214, %v225
  %v234 = vmul.f32 %v212, %v226
  %v235 = vmul.f32 %v219, %v223
  %v236 = vmul.f32 %v217, %v224
  %v237 = vmul.f32 %v215, %v225
  %v238 = vmul.f32 %v213, %v226
  %v239 = vpack.c.bf16 %v232, %v231
  %v240 = vpack.c.bf16 %v234, %v233
  %v241 = vpack.c.bf16 %v236, %v235
  %v242 = vpack.c.bf16 %v238, %v237
  %243 = vst [vmem:[#allocation3 + $0x60] sm:$0xff] %v239
  %244 = vst [vmem:[#allocation3 + $0x68] sm:$0xff] %v240
  %245 = vst [vmem:[#allocation3 + $0x70] sm:$0xff] %v241
  %246 = vst [vmem:[#allocation3 + $0x78] sm:$0xff] %v242
  %v247 = vpack.c.bf16 %v31, %v30
  %v248 = vpack.c.bf16 %v33, %v32
  %v249 = vpack.c.bf16 %v35, %v34
  %v250 = vpack.c.bf16 %v37, %v36
  %251 = vst [vmem:[#allocation3 + $0x80] sm:$0xff] %v247
  %252 = vst [vmem:[#allocation3 + $0x88] sm:$0xff] %v248
  %253 = vst [vmem:[#allocation3 + $0x90] sm:$0xff] %v249
  %254 = vst [vmem:[#allocation3 + $0x98] sm:$0xff] %v250
  %255 = vrot.lane.b32.xlu0 %v30, 127
  %v256 = vpop.permute.xlu0 %255
  %257 = vrot.lane.b32.xlu0 %v34, 127
  %v258 = vpop.permute.xlu0 %257
  %259 = vrot.lane.b32.xlu0 %v31, 127
  %v260 = vpop.permute.xlu0 %259
  %261 = vrot.lane.b32.xlu0 %v35, 127
  %v262 = vpop.permute.xlu0 %261
  %263 = vrot.lane.b32.xlu0 %v32, 127
  %v264 = vpop.permute.xlu0 %263
  %265 = vrot.lane.b32.xlu0 %v36, 127
  %v266 = vpop.permute.xlu0 %265
  %267 = vrot.lane.b32.xlu0 %v33, 127
  %v268 = vpop.permute.xlu0 %267
  %269 = vrot.lane.b32.xlu0 %v37, 127
  %v270 = vpop.permute.xlu0 %269
  %vm271 = vcmp.lt.s32.totalorder %v55, 127
  %v272 = vsel %vm271, %v264, %v268
  %v273 = vsel %vm271, %v266, %v270
  %v274 = vsel %vm271, %v260, %v264
  %v275 = vsel %vm271, %v262, %v266
  %v276 = vsel %vm271, %v256, %v260
  %v277 = vsel %vm271, %v258, %v262
  %v278 = vsel %vm271, %v268, %v256
  %v279 = vsel %vm271, %v270, %v258
  %s280 = scalar_lea.vmem %s1, 20
  %v281 = vld [vmem:[%s280] sm:$0xf]
  %v283 = vperm.slane %v281, 0
  %v284 = vperm.slane %v281, 1
  %v285 = vperm.slane %v281, 2
  %v286 = vperm.slane %v281, 3
  %v291 = vmul.f32 %v276, %v283
  %v292 = vmul.f32 %v274, %v284
  %v293 = vmul.f32 %v272, %v285
  %v294 = vmul.f32 %v278, %v286
  %v295 = vmul.f32 %v277, %v283
  %v296 = vmul.f32 %v275, %v284
  %v297 = vmul.f32 %v273, %v285
  %v298 = vmul.f32 %v279, %v286
  %v299 = vpack.c.bf16 %v292, %v291
  %v300 = vpack.c.bf16 %v294, %v293
  %v301 = vpack.c.bf16 %v296, %v295
  %v302 = vpack.c.bf16 %v298, %v297
  %303 = vst [vmem:[#allocation3 + $0xa0] sm:$0xff] %v299
  %304 = vst [vmem:[#allocation3 + $0xa8] sm:$0xff] %v300
  %305 = vst [vmem:[#allocation3 + $0xb0] sm:$0xff] %v301
  %306 = vst [vmem:[#allocation3 + $0xb8] sm:$0xff] %v302
  %307 = vrot.lane.b32.xlu0 %v30, 113
  %v308 = vpop.permute.xlu0 %307
  %309 = vrot.lane.b32.xlu0 %v34, 113
  %v310 = vpop.permute.xlu0 %309
  %311 = vrot.lane.b32.xlu0 %v31, 113
  %v312 = vpop.permute.xlu0 %311
  %313 = vrot.lane.b32.xlu0 %v35, 113
  %v314 = vpop.permute.xlu0 %313
  %315 = vrot.lane.b32.xlu0 %v32, 113
  %v316 = vpop.permute.xlu0 %315
  %317 = vrot.lane.b32.xlu0 %v36, 113
  %v318 = vpop.permute.xlu0 %317
  %319 = vrot.lane.b32.xlu0 %v33, 113
  %v320 = vpop.permute.xlu0 %319
  %321 = vrot.lane.b32.xlu0 %v37, 113
  %v322 = vpop.permute.xlu0 %321
  %vm323 = vcmp.lt.s32.totalorder %v55, 113
  %v324 = vsel %vm323, %v316, %v320
  %v325 = vsel %vm323, %v318, %v322
  %v326 = vsel %vm323, %v312, %v316
  %v327 = vsel %vm323, %v314, %v318
  %v328 = vsel %vm323, %v308, %v312
  %v329 = vsel %vm323, %v310, %v314
  %v330 = vsel %vm323, %v320, %v308
  %v331 = vsel %vm323, %v322, %v310
  %s332 = scalar_lea.vmem %s1, 24
  %v333 = vld [vmem:[%s332] sm:$0xf]
  %v335 = vperm.slane %v333, 0
  %v336 = vperm.slane %v333, 1
  %v337 = vperm.slane %v333, 2
  %v338 = vperm.slane %v333, 3
  %v343 = vmul.f32 %v328, %v335
  %v344 = vmul.f32 %v326, %v336
  %v345 = vmul.f32 %v324, %v337
  %v346 = vmul.f32 %v330, %v338
  %v347 = vmul.f32 %v329, %v335
  %v348 = vmul.f32 %v327, %v336
  %v349 = vmul.f32 %v325, %v337
  %v350 = vmul.f32 %v331, %v338
  %v351 = vpack.c.bf16 %v344, %v343
  %v352 = vpack.c.bf16 %v346, %v345
  %v353 = vpack.c.bf16 %v348, %v347
  %v354 = vpack.c.bf16 %v350, %v349
  %355 = vst [vmem:[#allocation3 + $0xc0] sm:$0xff] %v351
  %356 = vst [vmem:[#allocation3 + $0xc8] sm:$0xff] %v352
  %357 = vst [vmem:[#allocation3 + $0xd0] sm:$0xff] %v353
  %358 = vst [vmem:[#allocation3 + $0xd8] sm:$0xff] %v354
  %359 = vrot.lane.b32.xlu0 %v30, 112
  %v360 = vpop.permute.xlu0 %359
  %361 = vrot.lane.b32.xlu0 %v34, 112
  %v362 = vpop.permute.xlu0 %361
  %363 = vrot.lane.b32.xlu0 %v31, 112
  %v364 = vpop.permute.xlu0 %363
  %365 = vrot.lane.b32.xlu0 %v35, 112
  %v366 = vpop.permute.xlu0 %365
  %367 = vrot.lane.b32.xlu0 %v32, 112
  %v368 = vpop.permute.xlu0 %367
  %369 = vrot.lane.b32.xlu0 %v36, 112
  %v370 = vpop.permute.xlu0 %369
  %371 = vrot.lane.b32.xlu0 %v33, 112
  %v372 = vpop.permute.xlu0 %371
  %373 = vrot.lane.b32.xlu0 %v37, 112
  %v374 = vpop.permute.xlu0 %373
  %vm375 = vcmp.lt.s32.totalorder %v55, 112
  %v376 = vsel %vm375, %v368, %v372
  %v377 = vsel %vm375, %v370, %v374
  %v378 = vsel %vm375, %v364, %v368
  %v379 = vsel %vm375, %v366, %v370
  %v380 = vsel %vm375, %v360, %v364
  %v381 = vsel %vm375, %v362, %v366
  %v382 = vsel %vm375, %v372, %v360
  %v383 = vsel %vm375, %v374, %v362
  %s384 = scalar_lea.vmem %s1, 28
  %v385 = vld [vmem:[%s384] sm:$0xf]
  %v387 = vperm.slane %v385, 0
  %v388 = vperm.slane %v385, 1
  %v389 = vperm.slane %v385, 2
  %v390 = vperm.slane %v385, 3
  %v395 = vmul.f32 %v380, %v387
  %v396 = vmul.f32 %v378, %v388
  %v397 = vmul.f32 %v376, %v389
  %v398 = vmul.f32 %v382, %v390
  %v399 = vmul.f32 %v381, %v387
  %v400 = vmul.f32 %v379, %v388
  %v401 = vmul.f32 %v377, %v389
  %v402 = vmul.f32 %v383, %v390
  %v403 = vpack.c.bf16 %v396, %v395
  %v404 = vpack.c.bf16 %v398, %v397
  %v405 = vpack.c.bf16 %v400, %v399
  %v406 = vpack.c.bf16 %v402, %v401
  %407 = vst [vmem:[#allocation3 + $0xe0] sm:$0xff] %v403
  %408 = vst [vmem:[#allocation3 + $0xe8] sm:$0xff] %v404
  %409 = vst [vmem:[#allocation3 + $0xf0] sm:$0xff] %v405
  %410 = vst [vmem:[#allocation3 + $0xf8] sm:$0xff] %v406
  %411 = vrot.lane.b32.xlu0 %v30, 111
  %v412 = vpop.permute.xlu0 %411
  %413 = vrot.lane.b32.xlu0 %v34, 111
  %v414 = vpop.permute.xlu0 %413
  %415 = vrot.lane.b32.xlu0 %v31, 111
  %v416 = vpop.permute.xlu0 %415
  %417 = vrot.lane.b32.xlu0 %v35, 111
  %v418 = vpop.permute.xlu0 %417
  %419 = vrot.lane.b32.xlu0 %v32, 111
  %v420 = vpop.permute.xlu0 %419
  %421 = vrot.lane.b32.xlu0 %v36, 111
  %v422 = vpop.permute.xlu0 %421
  %423 = vrot.lane.b32.xlu0 %v33, 111
  %v424 = vpop.permute.xlu0 %423
  %425 = vrot.lane.b32.xlu0 %v37, 111
  %v426 = vpop.permute.xlu0 %425
  %vm427 = vcmp.lt.s32.totalorder %v55, 111
  %v428 = vsel %vm427, %v420, %v424
  %v429 = vsel %vm427, %v422, %v426
  %v430 = vsel %vm427, %v416, %v420
  %v431 = vsel %vm427, %v418, %v422
  %v432 = vsel %vm427, %v412, %v416
  %v433 = vsel %vm427, %v414, %v418
  %v434 = vsel %vm427, %v424, %v412
  %v435 = vsel %vm427, %v426, %v414
  %s436 = scalar_lea.vmem %s1, 32
  %v437 = vld [vmem:[%s436] sm:$0xf]
  %v439 = vperm.slane %v437, 0
  %v440 = vperm.slane %v437, 1
  %v441 = vperm.slane %v437, 2
  %v442 = vperm.slane %v437, 3
  %v447 = vmul.f32 %v432, %v439
  %v448 = vmul.f32 %v430, %v440
  %v449 = vmul.f32 %v428, %v441
  %v450 = vmul.f32 %v434, %v442
  %v451 = vmul.f32 %v433, %v439
  %v452 = vmul.f32 %v431, %v440
  %v453 = vmul.f32 %v429, %v441
  %v454 = vmul.f32 %v435, %v442
  %v455 = vpack.c.bf16 %v448, %v447
  %v456 = vpack.c.bf16 %v450, %v449
  %v457 = vpack.c.bf16 %v452, %v451
  %v458 = vpack.c.bf16 %v454, %v453
  %459 = vst [vmem:[#allocation3 + $0x100] sm:$0xff] %v455
  %460 = vst [vmem:[#allocation3 + $0x108] sm:$0xff] %v456
  %461 = vst [vmem:[#allocation3 + $0x110] sm:$0xff] %v457
  %462 = vst [vmem:[#allocation3 + $0x118] sm:$0xff] %v458
  %v463 = vld [vmem:[%s2] sm:$0xff]
  %v464 = vld [vmem:[%s2 + $0x8] sm:$0xff]
  %v465 = vld [vmem:[#allocation3] sm:$0xff]
  %v466 = vld [vmem:[#allocation3 + $0x8] sm:$0xff]
  %v467 = vld [vmem:[#allocation3 + $0x10] sm:$0xff]
  %v468 = vld [vmem:[#allocation3 + $0x18] sm:$0xff]
  %v469 = vld [vmem:[#allocation3 + $0x20] sm:$0xff]
  %v470 = vld [vmem:[#allocation3 + $0x28] sm:$0xff]
  %v471 = vld [vmem:[#allocation3 + $0x30] sm:$0xff]
  %v472 = vld [vmem:[#allocation3 + $0x38] sm:$0xff]
  %v473 = vld [vmem:[#allocation3 + $0x40] sm:$0xff]
  %v474 = vld [vmem:[#allocation3 + $0x48] sm:$0xff]
  %v475 = vld [vmem:[#allocation3 + $0x50] sm:$0xff]
  %v476 = vld [vmem:[#allocation3 + $0x58] sm:$0xff]
  %v477 = vld [vmem:[#allocation3 + $0x60] sm:$0xff]
  %v478 = vld [vmem:[#allocation3 + $0x68] sm:$0xff]
  %v479 = vld [vmem:[#allocation3 + $0x70] sm:$0xff]
  %v480 = vld [vmem:[#allocation3 + $0x78] sm:$0xff]
  %v481 = vld [vmem:[#allocation3 + $0x80] sm:$0xff]
  %v482 = vld [vmem:[#allocation3 + $0x88] sm:$0xff]
  %v483 = vld [vmem:[#allocation3 + $0x90] sm:$0xff]
  %v484 = vld [vmem:[#allocation3 + $0x98] sm:$0xff]
  %v485 = vld [vmem:[#allocation3 + $0xa0] sm:$0xff]
  %v486 = vld [vmem:[#allocation3 + $0xa8] sm:$0xff]
  %v487 = vld [vmem:[#allocation3 + $0xb0] sm:$0xff]
  %v488 = vld [vmem:[#allocation3 + $0xb8] sm:$0xff]
  %v489 = vld [vmem:[#allocation3 + $0xc0] sm:$0xff]
  %v490 = vld [vmem:[#allocation3 + $0xc8] sm:$0xff]
  %v491 = vld [vmem:[#allocation3 + $0xd0] sm:$0xff]
  %v492 = vld [vmem:[#allocation3 + $0xd8] sm:$0xff]
  %v493 = vld [vmem:[#allocation3 + $0xe0] sm:$0xff]
  %v494 = vld [vmem:[#allocation3 + $0xe8] sm:$0xff]
  %v495 = vld [vmem:[#allocation3 + $0xf0] sm:$0xff]
  %v496 = vld [vmem:[#allocation3 + $0xf8] sm:$0xff]
  %v497 = vld [vmem:[#allocation3 + $0x100] sm:$0xff]
  %v498 = vld [vmem:[#allocation3 + $0x108] sm:$0xff]
  %v499 = vld [vmem:[#allocation3 + $0x110] sm:$0xff]
  %v500 = vld [vmem:[#allocation3 + $0x118] sm:$0xff]
  %v503 = vunpack.c.l.b16 %v463
  %v504 = vunpack.c.h.b16 %v463
  %v505 = vunpack.c.l.b16 %v464
  %v506 = vunpack.c.h.b16 %v464
  %v507 = vpack.c.b16 %v505, %v503
  %v508 = vpack.c.b16 %v506, %v504
  %v546 = vunpack.c.l.b16 %v465
  %v547 = vunpack.c.h.b16 %v465
  %v548 = vunpack.c.l.b16 %v466
  %v549 = vunpack.c.h.b16 %v466
  %v550 = vunpack.c.l.b16 %v467
  %v551 = vunpack.c.h.b16 %v467
  %v552 = vunpack.c.l.b16 %v468
  %v553 = vunpack.c.h.b16 %v468
  %v554 = vunpack.c.l.b16 %v469
  %v555 = vunpack.c.h.b16 %v469
  %v556 = vunpack.c.l.b16 %v470
  %v557 = vunpack.c.h.b16 %v470
  %v558 = vunpack.c.l.b16 %v471
  %v559 = vunpack.c.h.b16 %v471
  %v560 = vunpack.c.l.b16 %v472
  %v561 = vunpack.c.h.b16 %v472
  %v562 = vunpack.c.l.b16 %v473
  %v563 = vunpack.c.h.b16 %v473
  %v564 = vunpack.c.l.b16 %v474
  %v565 = vunpack.c.h.b16 %v474
  %v566 = vunpack.c.l.b16 %v475
  %v567 = vunpack.c.h.b16 %v475
  %v568 = vunpack.c.l.b16 %v476
  %v569 = vunpack.c.h.b16 %v476
  %v570 = vunpack.c.l.b16 %v477
  %v571 = vunpack.c.h.b16 %v477
  %v572 = vunpack.c.l.b16 %v478
  %v573 = vunpack.c.h.b16 %v478
  %v574 = vunpack.c.l.b16 %v479
  %v575 = vunpack.c.h.b16 %v479
  %v576 = vunpack.c.l.b16 %v480
  %v577 = vunpack.c.h.b16 %v480
  %v578 = vunpack.c.l.b16 %v481
  %v579 = vunpack.c.h.b16 %v481
  %v580 = vunpack.c.l.b16 %v482
  %v581 = vunpack.c.h.b16 %v482
  %v582 = vunpack.c.l.b16 %v483
  %v583 = vunpack.c.h.b16 %v483
  %v584 = vunpack.c.l.b16 %v484
  %v585 = vunpack.c.h.b16 %v484
  %v586 = vunpack.c.l.b16 %v485
  %v587 = vunpack.c.h.b16 %v485
  %v588 = vunpack.c.l.b16 %v486
  %v589 = vunpack.c.h.b16 %v486
  %v590 = vunpack.c.l.b16 %v487
  %v591 = vunpack.c.h.b16 %v487
  %v592 = vunpack.c.l.b16 %v488
  %v593 = vunpack.c.h.b16 %v488
  %v594 = vunpack.c.l.b16 %v489
  %v595 = vunpack.c.h.b16 %v489
  %v596 = vunpack.c.l.b16 %v490
  %v597 = vunpack.c.h.b16 %v490
  %v598 = vunpack.c.l.b16 %v491
  %v599 = vunpack.c.h.b16 %v491
  %v600 = vunpack.c.l.b16 %v492
  %v601 = vunpack.c.h.b16 %v492
  %v602 = vunpack.c.l.b16 %v493
  %v603 = vunpack.c.h.b16 %v493
  %v604 = vunpack.c.l.b16 %v494
  %v605 = vunpack.c.h.b16 %v494
  %v606 = vunpack.c.l.b16 %v495
  %v607 = vunpack.c.h.b16 %v495
  %v608 = vunpack.c.l.b16 %v496
  %v609 = vunpack.c.h.b16 %v496
  %v610 = vunpack.c.l.b16 %v497
  %v611 = vunpack.c.h.b16 %v497
  %v612 = vunpack.c.l.b16 %v498
  %v613 = vunpack.c.h.b16 %v498
  %v614 = vunpack.c.l.b16 %v499
  %v615 = vunpack.c.h.b16 %v499
  %v616 = vunpack.c.l.b16 %v500
  %v617 = vunpack.c.h.b16 %v500
  %v618 = vpack.c.b16 %v550, %v546
  %v619 = vpack.c.b16 %v551, %v547
  %v620 = vpack.c.b16 %v552, %v548
  %v621 = vpack.c.b16 %v553, %v549
  %v622 = vpack.c.b16 %v558, %v554
  %v623 = vpack.c.b16 %v559, %v555
  %v624 = vpack.c.b16 %v560, %v556
  %v625 = vpack.c.b16 %v561, %v557
  %v626 = vpack.c.b16 %v566, %v562
  %v627 = vpack.c.b16 %v567, %v563
  %v628 = vpack.c.b16 %v568, %v564
  %v629 = vpack.c.b16 %v569, %v565
  %v630 = vpack.c.b16 %v574, %v570
  %v631 = vpack.c.b16 %v575, %v571
  %v632 = vpack.c.b16 %v576, %v572
  %v633 = vpack.c.b16 %v577, %v573
  %v634 = vpack.c.b16 %v582, %v578
  %v635 = vpack.c.b16 %v583, %v579
  %v636 = vpack.c.b16 %v584, %v580
  %v637 = vpack.c.b16 %v585, %v581
  %v638 = vpack.c.b16 %v590, %v586
  %v639 = vpack.c.b16 %v591, %v587
  %v640 = vpack.c.b16 %v592, %v588
  %v641 = vpack.c.b16 %v593, %v589
  %v642 = vpack.c.b16 %v598, %v594
  %v643 = vpack.c.b16 %v599, %v595
  %v644 = vpack.c.b16 %v600, %v596
  %v645 = vpack.c.b16 %v601, %v597
  %v646 = vpack.c.b16 %v606, %v602
  %v647 = vpack.c.b16 %v607, %v603
  %v648 = vpack.c.b16 %v608, %v604
  %v649 = vpack.c.b16 %v609, %v605
  %v650 = vpack.c.b16 %v614, %v610
  %v651 = vpack.c.b16 %v615, %v611
  %v652 = vpack.c.b16 %v616, %v612
  %v653 = vpack.c.b16 %v617, %v613
  %vm690 = vcmask 130048
  %v692 = vsel %vm690, %v508, 0
  %694 = vmatpush.bf16.msra.mxu0 %v646
  %695 = vmatpush.bf16.msra.mxu0 %v642
  %696 = vmatpush.bf16.msra.mxu0 %v638
  %697 = vmatpush.bf16.msra.mxu0 %v634
  %698 = vmatpush.bf16.msra.mxu0 %v630
  %699 = vmatpush.bf16.msra.mxu0 %v626
  %700 = vmatpush.bf16.msra.mxu0 %v622
  %701 = vmatpush.bf16.msra.mxu0 %v618
  %702 = vmatmul.bf16.gmra.mxu0 %v507
  %v703 = vpop.f32.mrf.mxu0
  %v704 = vadd.f32 0.0, %v703
  %v705 = vpop.f32.mrf.mxu0
  %v706 = vadd.f32 0.0, %v705
  %707 = vdwg.mxu0
  %708 = vmatpush.bf16.msra.mxu0 0
  %709 = vmatpush.bf16.msra.mxu0 0
  %710 = vmatpush.bf16.msra.mxu0 0
  %711 = vmatpush.bf16.msra.mxu0 0
  %712 = vmatpush.bf16.msra.mxu0 0
  %713 = vmatpush.bf16.msra.mxu0 0
  %714 = vmatpush.bf16.msra.mxu0 0
  %715 = vmatpush.bf16.msra.mxu0 %v650
  %716 = vmatmul.bf16.gmra.mxu0 %v692
  %v717 = vpop.f32.mrf.mxu0
  %v718 = vadd.f32 %v704, %v717
  %v719 = vpop.f32.mrf.mxu0
  %v720 = vadd.f32 %v706, %v719
  %721 = vdwg.mxu0
  %722 = vmatpush.bf16.msra.mxu0 %v647
  %723 = vmatpush.bf16.msra.mxu0 %v643
  %724 = vmatpush.bf16.msra.mxu0 %v639
  %725 = vmatpush.bf16.msra.mxu0 %v635
  %726 = vmatpush.bf16.msra.mxu0 %v631
  %727 = vmatpush.bf16.msra.mxu0 %v627
  %728 = vmatpush.bf16.msra.mxu0 %v623
  %729 = vmatpush.bf16.msra.mxu0 %v619
  %730 = vmatmul.bf16.gmra.mxu0 %v507
  %v731 = vpop.f32.mrf.mxu0
  %v732 = vadd.f32 0.0, %v731
  %v733 = vpop.f32.mrf.mxu0
  %v734 = vadd.f32 0.0, %v733
  %735 = vdwg.mxu0
  %736 = vmatpush.bf16.msra.mxu0 0
  %737 = vmatpush.bf16.msra.mxu0 0
  %738 = vmatpush.bf16.msra.mxu0 0
  %739 = vmatpush.bf16.msra.mxu0 0
  %740 = vmatpush.bf16.msra.mxu0 0
  %741 = vmatpush.bf16.msra.mxu0 0
  %742 = vmatpush.bf16.msra.mxu0 0
  %743 = vmatpush.bf16.msra.mxu0 %v651
  %744 = vmatmul.bf16.gmra.mxu0 %v692
  %v745 = vpop.f32.mrf.mxu0
  %v746 = vadd.f32 %v732, %v745
  %v747 = vpop.f32.mrf.mxu0
  %v748 = vadd.f32 %v734, %v747
  %749 = vdwg.mxu0
  %750 = vmatpush.bf16.msra.mxu0 %v648
  %751 = vmatpush.bf16.msra.mxu0 %v644
  %752 = vmatpush.bf16.msra.mxu0 %v640
  %753 = vmatpush.bf16.msra.mxu0 %v636
  %754 = vmatpush.bf16.msra.mxu0 %v632
  %755 = vmatpush.bf16.msra.mxu0 %v628
  %756 = vmatpush.bf16.msra.mxu0 %v624
  %757 = vmatpush.bf16.msra.mxu0 %v620
  %758 = vmatmul.bf16.gmra.mxu0 %v507
  %v759 = vpop.f32.mrf.mxu0
  %v760 = vadd.f32 0.0, %v759
  %v761 = vpop.f32.mrf.mxu0
  %v762 = vadd.f32 0.0, %v761
  %763 = vdwg.mxu0
  %764 = vmatpush.bf16.msra.mxu0 0
  %765 = vmatpush.bf16.msra.mxu0 0
  %766 = vmatpush.bf16.msra.mxu0 0
  %767 = vmatpush.bf16.msra.mxu0 0
  %768 = vmatpush.bf16.msra.mxu0 0
  %769 = vmatpush.bf16.msra.mxu0 0
  %770 = vmatpush.bf16.msra.mxu0 0
  %771 = vmatpush.bf16.msra.mxu0 %v652
  %772 = vmatmul.bf16.gmra.mxu0 %v692
  %v773 = vpop.f32.mrf.mxu0
  %v774 = vadd.f32 %v760, %v773
  %v775 = vpop.f32.mrf.mxu0
  %v776 = vadd.f32 %v762, %v775
  %777 = vdwg.mxu0
  %778 = vmatpush.bf16.msra.mxu0 %v649
  %779 = vmatpush.bf16.msra.mxu0 %v645
  %780 = vmatpush.bf16.msra.mxu0 %v641
  %781 = vmatpush.bf16.msra.mxu0 %v637
  %782 = vmatpush.bf16.msra.mxu0 %v633
  %783 = vmatpush.bf16.msra.mxu0 %v629
  %784 = vmatpush.bf16.msra.mxu0 %v625
  %785 = vmatpush.bf16.msra.mxu0 %v621
  %786 = vmatmul.bf16.gmra.mxu0 %v507
  %v787 = vpop.f32.mrf.mxu0
  %v788 = vadd.f32 0.0, %v787
  %v789 = vpop.f32.mrf.mxu0
  %v790 = vadd.f32 0.0, %v789
  %791 = vdwg.mxu0
  %792 = vmatpush.bf16.msra.mxu0 0
  %793 = vmatpush.bf16.msra.mxu0 0
  %794 = vmatpush.bf16.msra.mxu0 0
  %795 = vmatpush.bf16.msra.mxu0 0
  %796 = vmatpush.bf16.msra.mxu0 0
  %797 = vmatpush.bf16.msra.mxu0 0
  %798 = vmatpush.bf16.msra.mxu0 0
  %799 = vmatpush.bf16.msra.mxu0 %v653
  %800 = vmatmul.bf16.gmra.mxu0 %v692
  %v801 = vpop.f32.mrf.mxu0
  %v802 = vadd.f32 %v788, %v801
  %v803 = vpop.f32.mrf.mxu0
  %v804 = vadd.f32 %v790, %v803
  %805 = vdwg.mxu0
  %v806 = vld [vmem:[%s3] sm:$0xff]
  %v807 = vld [vmem:[%s3 + $0x8] sm:$0xff]
  %v808 = vld [vmem:[%s4] sm:$0xff]
  %v809 = vld [vmem:[%s4 + $0x8] sm:$0xff]
  %v810 = vadd.f32 %v718, %v746
  %v811 = vadd.f32 %v810, %v774
  %v812 = vadd.f32 %v811, %v802
  %813 = vadd.xlane.f32.xlu0 %v812
  %v814 = vpop.xlane.xlu0 %813
  %v815 = vadd.f32 %v720, %v748
  %v816 = vadd.f32 %v815, %v776
  %v817 = vadd.f32 %v816, %v804
  %818 = vadd.xlane.f32.xlu0 %v817
  %v819 = vpop.xlane.xlu0 %818
  %v820 = vmul.f32 %v718, %v718
  %v821 = vmul.f32 %v746, %v746
  %v822 = vmul.f32 %v774, %v774
  %v823 = vmul.f32 %v802, %v802
  %v824 = vmul.f32 %v720, %v720
  %v825 = vmul.f32 %v748, %v748
  %v826 = vmul.f32 %v776, %v776
  %v827 = vmul.f32 %v804, %v804
  %v828 = vadd.f32 %v820, %v821
  %v829 = vadd.f32 %v828, %v822
  %v830 = vadd.f32 %v829, %v823
  %831 = vadd.xlane.f32.xlu0 %v830
  %v832 = vpop.xlane.xlu0 %831
  %v833 = vadd.f32 %v824, %v825
  %v834 = vadd.f32 %v833, %v826
  %v835 = vadd.f32 %v834, %v827
  %836 = vadd.xlane.f32.xlu0 %v835
  %v837 = vpop.xlane.xlu0 %836
  %v838 = vmul.f32 %v814, 0.001953125
  %v839 = vmul.f32 %v819, 0.001953125
  %v840 = vmul.f32 %v832, 0.001953125
  %v841 = vmul.f32 %v837, 0.001953125
  %v842 = vmul.f32 %v838, %v838
  %v843 = vmul.f32 %v839, %v839
  %v844 = vsub.f32 %v840, %v842
  %v845 = vsub.f32 %v841, %v843
  %v846 = vadd.f32 %v844, 1e-05
  %v847 = vadd.f32 %v845, 1e-05
  %v848 = vrsqrt.pop %v846
  %v849 = vmul.f32 %v848, %v846
  %v850 = vmul.f32 %v849, %v848
  %v851 = vmul.f32 0.5, %v850
  %v852 = vsub.f32 1.5, %v851
  %v853 = vmul.f32 %v848, %v852
  %vm854 = vweird.f32 %v846
  %vm855 = vweird.f32 %v848
  %vm856 = vmor %vm854, %vm855
  %v857 = vsel %vm856, %v848, %v853
  %v858 = vrsqrt.pop %v847
  %v859 = vmul.f32 %v858, %v847
  %v860 = vmul.f32 %v859, %v858
  %v861 = vmul.f32 0.5, %v860
  %v862 = vsub.f32 1.5, %v861
  %v863 = vmul.f32 %v858, %v862
  %vm864 = vweird.f32 %v847
  %vm865 = vweird.f32 %v858
  %vm866 = vmor %vm864, %vm865
  %v867 = vsel %vm866, %v858, %v863
  %v868 = vmul.f32 %v806, %v857
  %v869 = vmul.f32 %v807, %v867
  %v870 = vmul.f32 %v838, %v868
  %v871 = vmul.f32 %v839, %v869
  %v872 = vsub.f32 %v808, %v870
  %v873 = vsub.f32 %v809, %v871
  %875 = vset.pattern.permute.xlu0 0
  %876 = vperm.xlu0 %875, %v868
  %v877 = vpop.permute.xlu0 %876
  %880 = vset.pattern.permute.xlu0 0
  %881 = vperm.xlu0 %880, %v869
  %v882 = vpop.permute.xlu0 %881
  %v884 = vmul.f32 %v718, %v877
  %v885 = vmul.f32 %v746, %v877
  %v886 = vmul.f32 %v774, %v877
  %v887 = vmul.f32 %v802, %v877
  %v888 = vmul.f32 %v720, %v882
  %v889 = vmul.f32 %v748, %v882
  %v890 = vmul.f32 %v776, %v882
  %v891 = vmul.f32 %v804, %v882
  %893 = vset.pattern.permute.xlu0 0
  %894 = vperm.xlu0 %893, %v872
  %v895 = vpop.permute.xlu0 %894
  %898 = vset.pattern.permute.xlu0 0
  %899 = vperm.xlu0 %898, %v873
  %v900 = vpop.permute.xlu0 %899
  %v902 = vadd.f32 %v884, %v895
  %v903 = vadd.f32 %v885, %v895
  %v904 = vadd.f32 %v886, %v895
  %v905 = vadd.f32 %v887, %v895
  %v906 = vadd.f32 %v888, %v900
  %v907 = vadd.f32 %v889, %v900
  %v908 = vadd.f32 %v890, %v900
  %v909 = vadd.f32 %v891, %v900
  %v910 = vmax.f32 %v902, 0.0
  %v911 = vmax.f32 %v903, 0.0
  %v912 = vmax.f32 %v904, 0.0
  %v913 = vmax.f32 %v905, 0.0
  %v914 = vmax.f32 %v906, 0.0
  %v915 = vmax.f32 %v907, 0.0
  %v916 = vmax.f32 %v908, 0.0
  %v917 = vmax.f32 %v909, 0.0
  %918 = vst [vmem:[#allocation2] sm:$0xff] %v910
  %919 = vst [vmem:[#allocation2 + $0x8] sm:$0xff] %v911
  %920 = vst [vmem:[#allocation2 + $0x10] sm:$0xff] %v912
  %921 = vst [vmem:[#allocation2 + $0x18] sm:$0xff] %v913
  %922 = vst [vmem:[#allocation2 + $0x20] sm:$0xff] %v914
  %923 = vst [vmem:[#allocation2 + $0x28] sm:$0xff] %v915
  %924 = vst [vmem:[#allocation2 + $0x30] sm:$0xff] %v916
  %925 = vst [vmem:[#allocation2 + $0x38] sm:$0xff] %v917
  %v926 = vld [vmem:[#allocation2] sm:$0xff]
  %v927 = vld [vmem:[#allocation2 + $0x8] sm:$0xff]
  %v928 = vld [vmem:[#allocation2 + $0x10] sm:$0xff]
  %v929 = vld [vmem:[#allocation2 + $0x18] sm:$0xff]
  %v930 = vld [vmem:[#allocation2 + $0x20] sm:$0xff]
  %v931 = vld [vmem:[#allocation2 + $0x28] sm:$0xff]
  %v932 = vld [vmem:[#allocation2 + $0x30] sm:$0xff]
  %v933 = vld [vmem:[#allocation2 + $0x38] sm:$0xff]
  %934 = vrot.lane.b32.xlu0 %v926, 17
  %v935 = vpop.permute.xlu0 %934
  %936 = vrot.lane.b32.xlu0 %v930, 17
  %v937 = vpop.permute.xlu0 %936
  %938 = vrot.lane.b32.xlu0 %v927, 17
  %v939 = vpop.permute.xlu0 %938
  %940 = vrot.lane.b32.xlu0 %v931, 17
  %v941 = vpop.permute.xlu0 %940
  %942 = vrot.lane.b32.xlu0 %v928, 17
  %v943 = vpop.permute.xlu0 %942
  %944 = vrot.lane.b32.xlu0 %v932, 17
  %v945 = vpop.permute.xlu0 %944
  %946 = vrot.lane.b32.xlu0 %v929, 17
  %v947 = vpop.permute.xlu0 %946
  %948 = vrot.lane.b32.xlu0 %v933, 17
  %v949 = vpop.permute.xlu0 %948
  %v950 = vsel %vm56, %v943, %v947
  %v951 = vsel %vm56, %v945, %v949
  %v952 = vsel %vm56, %v939, %v943
  %v953 = vsel %vm56, %v941, %v945
  %v954 = vsel %vm56, %v935, %v939
  %v955 = vsel %vm56, %v937, %v941
  %v956 = vsel %vm56, %v947, %v935
  %v957 = vsel %vm56, %v949, %v937
  %v958 = vld [vmem:[%s1] sm:$0xf]
  %v960 = vperm.slane %v958, 0
  %v961 = vperm.slane %v958, 1
  %v962 = vperm.slane %v958, 2
  %v963 = vperm.slane %v958, 3
  %v968 = vmul.f32 %v956, %v960
  %v969 = vmul.f32 %v954, %v961
  %v970 = vmul.f32 %v952, %v962
  %v971 = vmul.f32 %v950, %v963
  %v972 = vmul.f32 %v957, %v960
  %v973 = vmul.f32 %v955, %v961
  %v974 = vmul.f32 %v953, %v962
  %v975 = vmul.f32 %v951, %v963
  %v976 = vpack.c.bf16 %v969, %v968
  %v977 = vpack.c.bf16 %v971, %v970
  %v978 = vpack.c.bf16 %v973, %v972
  %v979 = vpack.c.bf16 %v975, %v974
  %980 = vst [vmem:[#allocation3] sm:$0xff] %v976
  %981 = vst [vmem:[#allocation3 + $0x8] sm:$0xff] %v977
  %982 = vst [vmem:[#allocation3 + $0x10] sm:$0xff] %v978
  %983 = vst [vmem:[#allocation3 + $0x18] sm:$0xff] %v979
  %984 = vrot.lane.b32.xlu0 %v926, 16
  %v985 = vpop.permute.xlu0 %984
  %986 = vrot.lane.b32.xlu0 %v930, 16
  %v987 = vpop.permute.xlu0 %986
  %988 = vrot.lane.b32.xlu0 %v927, 16
  %v989 = vpop.permute.xlu0 %988
  %990 = vrot.lane.b32.xlu0 %v931, 16
  %v991 = vpop.permute.xlu0 %990
  %992 = vrot.lane.b32.xlu0 %v928, 16
  %v993 = vpop.permute.xlu0 %992
  %994 = vrot.lane.b32.xlu0 %v932, 16
  %v995 = vpop.permute.xlu0 %994
  %996 = vrot.lane.b32.xlu0 %v929, 16
  %v997 = vpop.permute.xlu0 %996
  %998 = vrot.lane.b32.xlu0 %v933, 16
  %v999 = vpop.permute.xlu0 %998
  %v1000 = vsel %vm107, %v993, %v997
  %v1001 = vsel %vm107, %v995, %v999
  %v1002 = vsel %vm107, %v989, %v993
  %v1003 = vsel %vm107, %v991, %v995
  %v1004 = vsel %vm107, %v985, %v989
  %v1005 = vsel %vm107, %v987, %v991
  %v1006 = vsel %vm107, %v997, %v985
  %v1007 = vsel %vm107, %v999, %v987
  %v1008 = vld [vmem:[%s116] sm:$0xf]
  %v1010 = vperm.slane %v1008, 0
  %v1011 = vperm.slane %v1008, 1
  %v1012 = vperm.slane %v1008, 2
  %v1013 = vperm.slane %v1008, 3
  %v1018 = vmul.f32 %v1006, %v1010
  %v1019 = vmul.f32 %v1004, %v1011
  %v1020 = vmul.f32 %v1002, %v1012
  %v1021 = vmul.f32 %v1000, %v1013
  %v1022 = vmul.f32 %v1007, %v1010
  %v1023 = vmul.f32 %v1005, %v1011
  %v1024 = vmul.f32 %v1003, %v1012
  %v1025 = vmul.f32 %v1001, %v1013
  %v1026 = vpack.c.bf16 %v1019, %v1018
  %v1027 = vpack.c.bf16 %v1021, %v1020
  %v1028 = vpack.c.bf16 %v1023, %v1022
  %v1029 = vpack.c.bf16 %v1025, %v1024
  %1030 = vst [vmem:[#allocation3 + $0x20] sm:$0xff] %v1026
  %1031 = vst [vmem:[#allocation3 + $0x28] sm:$0xff] %v1027
  %1032 = vst [vmem:[#allocation3 + $0x30] sm:$0xff] %v1028
  %1033 = vst [vmem:[#allocation3 + $0x38] sm:$0xff] %v1029
  %1034 = vrot.lane.b32.xlu0 %v926, 15
  %v1035 = vpop.permute.xlu0 %1034
  %1036 = vrot.lane.b32.xlu0 %v930, 15
  %v1037 = vpop.permute.xlu0 %1036
  %1038 = vrot.lane.b32.xlu0 %v927, 15
  %v1039 = vpop.permute.xlu0 %1038
  %1040 = vrot.lane.b32.xlu0 %v931, 15
  %v1041 = vpop.permute.xlu0 %1040
  %1042 = vrot.lane.b32.xlu0 %v928, 15
  %v1043 = vpop.permute.xlu0 %1042
  %1044 = vrot.lane.b32.xlu0 %v932, 15
  %v1045 = vpop.permute.xlu0 %1044
  %1046 = vrot.lane.b32.xlu0 %v929, 15
  %v1047 = vpop.permute.xlu0 %1046
  %1048 = vrot.lane.b32.xlu0 %v933, 15
  %v1049 = vpop.permute.xlu0 %1048
  %v1050 = vsel %vm159, %v1043, %v1047
  %v1051 = vsel %vm159, %v1045, %v1049
  %v1052 = vsel %vm159, %v1039, %v1043
  %v1053 = vsel %vm159, %v1041, %v1045
  %v1054 = vsel %vm159, %v1035, %v1039
  %v1055 = vsel %vm159, %v1037, %v1041
  %v1056 = vsel %vm159, %v1047, %v1035
  %v1057 = vsel %vm159, %v1049, %v1037
  %v1058 = vld [vmem:[%s168] sm:$0xf]
  %v1060 = vperm.slane %v1058, 0
  %v1061 = vperm.slane %v1058, 1
  %v1062 = vperm.slane %v1058, 2
  %v1063 = vperm.slane %v1058, 3
  %v1068 = vmul.f32 %v1056, %v1060
  %v1069 = vmul.f32 %v1054, %v1061
  %v1070 = vmul.f32 %v1052, %v1062
  %v1071 = vmul.f32 %v1050, %v1063
  %v1072 = vmul.f32 %v1057, %v1060
  %v1073 = vmul.f32 %v1055, %v1061
  %v1074 = vmul.f32 %v1053, %v1062
  %v1075 = vmul.f32 %v1051, %v1063
  %v1076 = vpack.c.bf16 %v1069, %v1068
  %v1077 = vpack.c.bf16 %v1071, %v1070
  %v1078 = vpack.c.bf16 %v1073, %v1072
  %v1079 = vpack.c.bf16 %v1075, %v1074
  %1080 = vst [vmem:[#allocation3 + $0x40] sm:$0xff] %v1076
  %1081 = vst [vmem:[#allocation3 + $0x48] sm:$0xff] %v1077
  %1082 = vst [vmem:[#allocation3 + $0x50] sm:$0xff] %v1078
  %1083 = vst [vmem:[#allocation3 + $0x58] sm:$0xff] %v1079
  %1084 = vrot.lane.b32.xlu0 %v926, 1
  %v1085 = vpop.permute.xlu0 %1084
  %1086 = vrot.lane.b32.xlu0 %v930, 1
  %v1087 = vpop.permute.xlu0 %1086
  %1088 = vrot.lane.b32.xlu0 %v927, 1
  %v1089 = vpop.permute.xlu0 %1088
  %1090 = vrot.lane.b32.xlu0 %v931, 1
  %v1091 = vpop.permute.xlu0 %1090
  %1092 = vrot.lane.b32.xlu0 %v928, 1
  %v1093 = vpop.permute.xlu0 %1092
  %1094 = vrot.lane.b32.xlu0 %v932, 1
  %v1095 = vpop.permute.xlu0 %1094
  %1096 = vrot.lane.b32.xlu0 %v929, 1
  %v1097 = vpop.permute.xlu0 %1096
  %1098 = vrot.lane.b32.xlu0 %v933, 1
  %v1099 = vpop.permute.xlu0 %1098
  %v1100 = vsel %vm211, %v1093, %v1097
  %v1101 = vsel %vm211, %v1095, %v1099
  %v1102 = vsel %vm211, %v1089, %v1093
  %v1103 = vsel %vm211, %v1091, %v1095
  %v1104 = vsel %vm211, %v1085, %v1089
  %v1105 = vsel %vm211, %v1087, %v1091
  %v1106 = vsel %vm211, %v1097, %v1085
  %v1107 = vsel %vm211, %v1099, %v1087
  %v1108 = vld [vmem:[%s220] sm:$0xf]
  %v1110 = vperm.slane %v1108, 0
  %v1111 = vperm.slane %v1108, 1
  %v1112 = vperm.slane %v1108, 2
  %v1113 = vperm.slane %v1108, 3
  %v1118 = vmul.f32 %v1106, %v1110
  %v1119 = vmul.f32 %v1104, %v1111
  %v1120 = vmul.f32 %v1102, %v1112
  %v1121 = vmul.f32 %v1100, %v1113
  %v1122 = vmul.f32 %v1107, %v1110
  %v1123 = vmul.f32 %v1105, %v1111
  %v1124 = vmul.f32 %v1103, %v1112
  %v1125 = vmul.f32 %v1101, %v1113
  %v1126 = vpack.c.bf16 %v1119, %v1118
  %v1127 = vpack.c.bf16 %v1121, %v1120
  %v1128 = vpack.c.bf16 %v1123, %v1122
  %v1129 = vpack.c.bf16 %v1125, %v1124
  %1130 = vst [vmem:[#allocation3 + $0x60] sm:$0xff] %v1126
  %1131 = vst [vmem:[#allocation3 + $0x68] sm:$0xff] %v1127
  %1132 = vst [vmem:[#allocation3 + $0x70] sm:$0xff] %v1128
  %1133 = vst [vmem:[#allocation3 + $0x78] sm:$0xff] %v1129
  %v1134 = vpack.c.bf16 %v927, %v926
  %v1135 = vpack.c.bf16 %v929, %v928
  %v1136 = vpack.c.bf16 %v931, %v930
  %v1137 = vpack.c.bf16 %v933, %v932
  %1138 = vst [vmem:[#allocation3 + $0x80] sm:$0xff] %v1134
  %1139 = vst [vmem:[#allocation3 + $0x88] sm:$0xff] %v1135
  %1140 = vst [vmem:[#allocation3 + $0x90] sm:$0xff] %v1136
  %1141 = vst [vmem:[#allocation3 + $0x98] sm:$0xff] %v1137
  %1142 = vrot.lane.b32.xlu0 %v926, 127
  %v1143 = vpop.permute.xlu0 %1142
  %1144 = vrot.lane.b32.xlu0 %v930, 127
  %v1145 = vpop.permute.xlu0 %1144
  %1146 = vrot.lane.b32.xlu0 %v927, 127
  %v1147 = vpop.permute.xlu0 %1146
  %1148 = vrot.lane.b32.xlu0 %v931, 127
  %v1149 = vpop.permute.xlu0 %1148
  %1150 = vrot.lane.b32.xlu0 %v928, 127
  %v1151 = vpop.permute.xlu0 %1150
  %1152 = vrot.lane.b32.xlu0 %v932, 127
  %v1153 = vpop.permute.xlu0 %1152
  %1154 = vrot.lane.b32.xlu0 %v929, 127
  %v1155 = vpop.permute.xlu0 %1154
  %1156 = vrot.lane.b32.xlu0 %v933, 127
  %v1157 = vpop.permute.xlu0 %1156
  %v1158 = vsel %vm271, %v1151, %v1155
  %v1159 = vsel %vm271, %v1153, %v1157
  %v1160 = vsel %vm271, %v1147, %v1151
  %v1161 = vsel %vm271, %v1149, %v1153
  %v1162 = vsel %vm271, %v1143, %v1147
  %v1163 = vsel %vm271, %v1145, %v1149
  %v1164 = vsel %vm271, %v1155, %v1143
  %v1165 = vsel %vm271, %v1157, %v1145
  %v1166 = vld [vmem:[%s280] sm:$0xf]
  %v1168 = vperm.slane %v1166, 0
  %v1169 = vperm.slane %v1166, 1
  %v1170 = vperm.slane %v1166, 2
  %v1171 = vperm.slane %v1166, 3
  %v1176 = vmul.f32 %v1162, %v1168
  %v1177 = vmul.f32 %v1160, %v1169
  %v1178 = vmul.f32 %v1158, %v1170
  %v1179 = vmul.f32 %v1164, %v1171
  %v1180 = vmul.f32 %v1163, %v1168
  %v1181 = vmul.f32 %v1161, %v1169
  %v1182 = vmul.f32 %v1159, %v1170
  %v1183 = vmul.f32 %v1165, %v1171
  %v1184 = vpack.c.bf16 %v1177, %v1176
  %v1185 = vpack.c.bf16 %v1179, %v1178
  %v1186 = vpack.c.bf16 %v1181, %v1180
  %v1187 = vpack.c.bf16 %v1183, %v1182
  %1188 = vst [vmem:[#allocation3 + $0xa0] sm:$0xff] %v1184
  %1189 = vst [vmem:[#allocation3 + $0xa8] sm:$0xff] %v1185
  %1190 = vst [vmem:[#allocation3 + $0xb0] sm:$0xff] %v1186
  %1191 = vst [vmem:[#allocation3 + $0xb8] sm:$0xff] %v1187
  %1192 = vrot.lane.b32.xlu0 %v926, 113
  %v1193 = vpop.permute.xlu0 %1192
  %1194 = vrot.lane.b32.xlu0 %v930, 113
  %v1195 = vpop.permute.xlu0 %1194
  %1196 = vrot.lane.b32.xlu0 %v927, 113
  %v1197 = vpop.permute.xlu0 %1196
  %1198 = vrot.lane.b32.xlu0 %v931, 113
  %v1199 = vpop.permute.xlu0 %1198
  %1200 = vrot.lane.b32.xlu0 %v928, 113
  %v1201 = vpop.permute.xlu0 %1200
  %1202 = vrot.lane.b32.xlu0 %v932, 113
  %v1203 = vpop.permute.xlu0 %1202
  %1204 = vrot.lane.b32.xlu0 %v929, 113
  %v1205 = vpop.permute.xlu0 %1204
  %1206 = vrot.lane.b32.xlu0 %v933, 113
  %v1207 = vpop.permute.xlu0 %1206
  %v1208 = vsel %vm323, %v1201, %v1205
  %v1209 = vsel %vm323, %v1203, %v1207
  %v1210 = vsel %vm323, %v1197, %v1201
  %v1211 = vsel %vm323, %v1199, %v1203
  %v1212 = vsel %vm323, %v1193, %v1197
  %v1213 = vsel %vm323, %v1195, %v1199
  %v1214 = vsel %vm323, %v1205, %v1193
  %v1215 = vsel %vm323, %v1207, %v1195
  %v1216 = vld [vmem:[%s332] sm:$0xf]
  %v1218 = vperm.slane %v1216, 0
  %v1219 = vperm.slane %v1216, 1
  %v1220 = vperm.slane %v1216, 2
  %v1221 = vperm.slane %v1216, 3
  %v1226 = vmul.f32 %v1212, %v1218
  %v1227 = vmul.f32 %v1210, %v1219
  %v1228 = vmul.f32 %v1208, %v1220
  %v1229 = vmul.f32 %v1214, %v1221
  %v1230 = vmul.f32 %v1213, %v1218
  %v1231 = vmul.f32 %v1211, %v1219
  %v1232 = vmul.f32 %v1209, %v1220
  %v1233 = vmul.f32 %v1215, %v1221
  %v1234 = vpack.c.bf16 %v1227, %v1226
  %v1235 = vpack.c.bf16 %v1229, %v1228
  %v1236 = vpack.c.bf16 %v1231, %v1230
  %v1237 = vpack.c.bf16 %v1233, %v1232
  %1238 = vst [vmem:[#allocation3 + $0xc0] sm:$0xff] %v1234
  %1239 = vst [vmem:[#allocation3 + $0xc8] sm:$0xff] %v1235
  %1240 = vst [vmem:[#allocation3 + $0xd0] sm:$0xff] %v1236
  %1241 = vst [vmem:[#allocation3 + $0xd8] sm:$0xff] %v1237
  %1242 = vrot.lane.b32.xlu0 %v926, 112
  %v1243 = vpop.permute.xlu0 %1242
  %1244 = vrot.lane.b32.xlu0 %v930, 112
  %v1245 = vpop.permute.xlu0 %1244
  %1246 = vrot.lane.b32.xlu0 %v927, 112
  %v1247 = vpop.permute.xlu0 %1246
  %1248 = vrot.lane.b32.xlu0 %v931, 112
  %v1249 = vpop.permute.xlu0 %1248
  %1250 = vrot.lane.b32.xlu0 %v928, 112
  %v1251 = vpop.permute.xlu0 %1250
  %1252 = vrot.lane.b32.xlu0 %v932, 112
  %v1253 = vpop.permute.xlu0 %1252
  %1254 = vrot.lane.b32.xlu0 %v929, 112
  %v1255 = vpop.permute.xlu0 %1254
  %1256 = vrot.lane.b32.xlu0 %v933, 112
  %v1257 = vpop.permute.xlu0 %1256
  %v1258 = vsel %vm375, %v1251, %v1255
  %v1259 = vsel %vm375, %v1253, %v1257
  %v1260 = vsel %vm375, %v1247, %v1251
  %v1261 = vsel %vm375, %v1249, %v1253
  %v1262 = vsel %vm375, %v1243, %v1247
  %v1263 = vsel %vm375, %v1245, %v1249
  %v1264 = vsel %vm375, %v1255, %v1243
  %v1265 = vsel %vm375, %v1257, %v1245
  %v1266 = vld [vmem:[%s384] sm:$0xf]
  %v1268 = vperm.slane %v1266, 0
  %v1269 = vperm.slane %v1266, 1
  %v1270 = vperm.slane %v1266, 2
  %v1271 = vperm.slane %v1266, 3
  %v1276 = vmul.f32 %v1262, %v1268
  %v1277 = vmul.f32 %v1260, %v1269
  %v1278 = vmul.f32 %v1258, %v1270
  %v1279 = vmul.f32 %v1264, %v1271
  %v1280 = vmul.f32 %v1263, %v1268
  %v1281 = vmul.f32 %v1261, %v1269
  %v1282 = vmul.f32 %v1259, %v1270
  %v1283 = vmul.f32 %v1265, %v1271
  %v1284 = vpack.c.bf16 %v1277, %v1276
  %v1285 = vpack.c.bf16 %v1279, %v1278
  %v1286 = vpack.c.bf16 %v1281, %v1280
  %v1287 = vpack.c.bf16 %v1283, %v1282
  %1288 = vst [vmem:[#allocation3 + $0xe0] sm:$0xff] %v1284
  %1289 = vst [vmem:[#allocation3 + $0xe8] sm:$0xff] %v1285
  %1290 = vst [vmem:[#allocation3 + $0xf0] sm:$0xff] %v1286
  %1291 = vst [vmem:[#allocation3 + $0xf8] sm:$0xff] %v1287
  %1292 = vrot.lane.b32.xlu0 %v926, 111
  %v1293 = vpop.permute.xlu0 %1292
  %1294 = vrot.lane.b32.xlu0 %v930, 111
  %v1295 = vpop.permute.xlu0 %1294
  %1296 = vrot.lane.b32.xlu0 %v927, 111
  %v1297 = vpop.permute.xlu0 %1296
  %1298 = vrot.lane.b32.xlu0 %v931, 111
  %v1299 = vpop.permute.xlu0 %1298
  %1300 = vrot.lane.b32.xlu0 %v928, 111
  %v1301 = vpop.permute.xlu0 %1300
  %1302 = vrot.lane.b32.xlu0 %v932, 111
  %v1303 = vpop.permute.xlu0 %1302
  %1304 = vrot.lane.b32.xlu0 %v929, 111
  %v1305 = vpop.permute.xlu0 %1304
  %1306 = vrot.lane.b32.xlu0 %v933, 111
  %v1307 = vpop.permute.xlu0 %1306
  %v1308 = vsel %vm427, %v1301, %v1305
  %v1309 = vsel %vm427, %v1303, %v1307
  %v1310 = vsel %vm427, %v1297, %v1301
  %v1311 = vsel %vm427, %v1299, %v1303
  %v1312 = vsel %vm427, %v1293, %v1297
  %v1313 = vsel %vm427, %v1295, %v1299
  %v1314 = vsel %vm427, %v1305, %v1293
  %v1315 = vsel %vm427, %v1307, %v1295
  %v1316 = vld [vmem:[%s436] sm:$0xf]
  %v1318 = vperm.slane %v1316, 0
  %v1319 = vperm.slane %v1316, 1
  %v1320 = vperm.slane %v1316, 2
  %v1321 = vperm.slane %v1316, 3
  %v1326 = vmul.f32 %v1312, %v1318
  %v1327 = vmul.f32 %v1310, %v1319
  %v1328 = vmul.f32 %v1308, %v1320
  %v1329 = vmul.f32 %v1314, %v1321
  %v1330 = vmul.f32 %v1313, %v1318
  %v1331 = vmul.f32 %v1311, %v1319
  %v1332 = vmul.f32 %v1309, %v1320
  %v1333 = vmul.f32 %v1315, %v1321
  %v1334 = vpack.c.bf16 %v1327, %v1326
  %v1335 = vpack.c.bf16 %v1329, %v1328
  %v1336 = vpack.c.bf16 %v1331, %v1330
  %v1337 = vpack.c.bf16 %v1333, %v1332
  %1338 = vst [vmem:[#allocation3 + $0x100] sm:$0xff] %v1334
  %1339 = vst [vmem:[#allocation3 + $0x108] sm:$0xff] %v1335
  %1340 = vst [vmem:[#allocation3 + $0x110] sm:$0xff] %v1336
  %1341 = vst [vmem:[#allocation3 + $0x118] sm:$0xff] %v1337
  %v1342 = vld [vmem:[%s5] sm:$0xff]
  %v1343 = vld [vmem:[%s5 + $0x8] sm:$0xff]
  %v1344 = vld [vmem:[#allocation3] sm:$0xff]
  %v1345 = vld [vmem:[#allocation3 + $0x8] sm:$0xff]
  %v1346 = vld [vmem:[#allocation3 + $0x10] sm:$0xff]
  %v1347 = vld [vmem:[#allocation3 + $0x18] sm:$0xff]
  %v1348 = vld [vmem:[#allocation3 + $0x20] sm:$0xff]
  %v1349 = vld [vmem:[#allocation3 + $0x28] sm:$0xff]
  %v1350 = vld [vmem:[#allocation3 + $0x30] sm:$0xff]
  %v1351 = vld [vmem:[#allocation3 + $0x38] sm:$0xff]
  %v1352 = vld [vmem:[#allocation3 + $0x40] sm:$0xff]
  %v1353 = vld [vmem:[#allocation3 + $0x48] sm:$0xff]
  %v1354 = vld [vmem:[#allocation3 + $0x50] sm:$0xff]
  %v1355 = vld [vmem:[#allocation3 + $0x58] sm:$0xff]
  %v1356 = vld [vmem:[#allocation3 + $0x60] sm:$0xff]
  %v1357 = vld [vmem:[#allocation3 + $0x68] sm:$0xff]
  %v1358 = vld [vmem:[#allocation3 + $0x70] sm:$0xff]
  %v1359 = vld [vmem:[#allocation3 + $0x78] sm:$0xff]
  %v1360 = vld [vmem:[#allocation3 + $0x80] sm:$0xff]
  %v1361 = vld [vmem:[#allocation3 + $0x88] sm:$0xff]
  %v1362 = vld [vmem:[#allocation3 + $0x90] sm:$0xff]
  %v1363 = vld [vmem:[#allocation3 + $0x98] sm:$0xff]
  %v1364 = vld [vmem:[#allocation3 + $0xa0] sm:$0xff]
  %v1365 = vld [vmem:[#allocation3 + $0xa8] sm:$0xff]
  %v1366 = vld [vmem:[#allocation3 + $0xb0] sm:$0xff]
  %v1367 = vld [vmem:[#allocation3 + $0xb8] sm:$0xff]
  %v1368 = vld [vmem:[#allocation3 + $0xc0] sm:$0xff]
  %v1369 = vld [vmem:[#allocation3 + $0xc8] sm:$0xff]
  %v1370 = vld [vmem:[#allocation3 + $0xd0] sm:$0xff]
  %v1371 = vld [vmem:[#allocation3 + $0xd8] sm:$0xff]
  %v1372 = vld [vmem:[#allocation3 + $0xe0] sm:$0xff]
  %v1373 = vld [vmem:[#allocation3 + $0xe8] sm:$0xff]
  %v1374 = vld [vmem:[#allocation3 + $0xf0] sm:$0xff]
  %v1375 = vld [vmem:[#allocation3 + $0xf8] sm:$0xff]
  %v1376 = vld [vmem:[#allocation3 + $0x100] sm:$0xff]
  %v1377 = vld [vmem:[#allocation3 + $0x108] sm:$0xff]
  %v1378 = vld [vmem:[#allocation3 + $0x110] sm:$0xff]
  %v1379 = vld [vmem:[#allocation3 + $0x118] sm:$0xff]
  %v1382 = vunpack.c.l.b16 %v1342
  %v1383 = vunpack.c.h.b16 %v1342
  %v1384 = vunpack.c.l.b16 %v1343
  %v1385 = vunpack.c.h.b16 %v1343
  %v1386 = vpack.c.b16 %v1384, %v1382
  %v1387 = vpack.c.b16 %v1385, %v1383
  %v1425 = vunpack.c.l.b16 %v1344
  %v1426 = vunpack.c.h.b16 %v1344
  %v1427 = vunpack.c.l.b16 %v1345
  %v1428 = vunpack.c.h.b16 %v1345
  %v1429 = vunpack.c.l.b16 %v1346
  %v1430 = vunpack.c.h.b16 %v1346
  %v1431 = vunpack.c.l.b16 %v1347
  %v1432 = vunpack.c.h.b16 %v1347
  %v1433 = vunpack.c.l.b16 %v1348
  %v1434 = vunpack.c.h.b16 %v1348
  %v1435 = vunpack.c.l.b16 %v1349
  %v1436 = vunpack.c.h.b16 %v1349
  %v1437 = vunpack.c.l.b16 %v1350
  %v1438 = vunpack.c.h.b16 %v1350
  %v1439 = vunpack.c.l.b16 %v1351
  %v1440 = vunpack.c.h.b16 %v1351
  %v1441 = vunpack.c.l.b16 %v1352
  %v1442 = vunpack.c.h.b16 %v1352
  %v1443 = vunpack.c.l.b16 %v1353
  %v1444 = vunpack.c.h.b16 %v1353
  %v1445 = vunpack.c.l.b16 %v1354
  %v1446 = vunpack.c.h.b16 %v1354
  %v1447 = vunpack.c.l.b16 %v1355
  %v1448 = vunpack.c.h.b16 %v1355
  %v1449 = vunpack.c.l.b16 %v1356
  %v1450 = vunpack.c.h.b16 %v1356
  %v1451 = vunpack.c.l.b16 %v1357
  %v1452 = vunpack.c.h.b16 %v1357
  %v1453 = vunpack.c.l.b16 %v1358
  %v1454 = vunpack.c.h.b16 %v1358
  %v1455 = vunpack.c.l.b16 %v1359
  %v1456 = vunpack.c.h.b16 %v1359
  %v1457 = vunpack.c.l.b16 %v1360
  %v1458 = vunpack.c.h.b16 %v1360
  %v1459 = vunpack.c.l.b16 %v1361
  %v1460 = vunpack.c.h.b16 %v1361
  %v1461 = vunpack.c.l.b16 %v1362
  %v1462 = vunpack.c.h.b16 %v1362
  %v1463 = vunpack.c.l.b16 %v1363
  %v1464 = vunpack.c.h.b16 %v1363
  %v1465 = vunpack.c.l.b16 %v1364
  %v1466 = vunpack.c.h.b16 %v1364
  %v1467 = vunpack.c.l.b16 %v1365
  %v1468 = vunpack.c.h.b16 %v1365
  %v1469 = vunpack.c.l.b16 %v1366
  %v1470 = vunpack.c.h.b16 %v1366
  %v1471 = vunpack.c.l.b16 %v1367
  %v1472 = vunpack.c.h.b16 %v1367
  %v1473 = vunpack.c.l.b16 %v1368
  %v1474 = vunpack.c.h.b16 %v1368
  %v1475 = vunpack.c.l.b16 %v1369
  %v1476 = vunpack.c.h.b16 %v1369
  %v1477 = vunpack.c.l.b16 %v1370
  %v1478 = vunpack.c.h.b16 %v1370
  %v1479 = vunpack.c.l.b16 %v1371
  %v1480 = vunpack.c.h.b16 %v1371
  %v1481 = vunpack.c.l.b16 %v1372
  %v1482 = vunpack.c.h.b16 %v1372
  %v1483 = vunpack.c.l.b16 %v1373
  %v1484 = vunpack.c.h.b16 %v1373
  %v1485 = vunpack.c.l.b16 %v1374
  %v1486 = vunpack.c.h.b16 %v1374
  %v1487 = vunpack.c.l.b16 %v1375
  %v1488 = vunpack.c.h.b16 %v1375
  %v1489 = vunpack.c.l.b16 %v1376
  %v1490 = vunpack.c.h.b16 %v1376
  %v1491 = vunpack.c.l.b16 %v1377
  %v1492 = vunpack.c.h.b16 %v1377
  %v1493 = vunpack.c.l.b16 %v1378
  %v1494 = vunpack.c.h.b16 %v1378
  %v1495 = vunpack.c.l.b16 %v1379
  %v1496 = vunpack.c.h.b16 %v1379
  %v1497 = vpack.c.b16 %v1429, %v1425
  %v1498 = vpack.c.b16 %v1430, %v1426
  %v1499 = vpack.c.b16 %v1431, %v1427
  %v1500 = vpack.c.b16 %v1432, %v1428
  %v1501 = vpack.c.b16 %v1437, %v1433
  %v1502 = vpack.c.b16 %v1438, %v1434
  %v1503 = vpack.c.b16 %v1439, %v1435
  %v1504 = vpack.c.b16 %v1440, %v1436
  %v1505 = vpack.c.b16 %v1445, %v1441
  %v1506 = vpack.c.b16 %v1446, %v1442
  %v1507 = vpack.c.b16 %v1447, %v1443
  %v1508 = vpack.c.b16 %v1448, %v1444
  %v1509 = vpack.c.b16 %v1453, %v1449
  %v1510 = vpack.c.b16 %v1454, %v1450
  %v1511 = vpack.c.b16 %v1455, %v1451
  %v1512 = vpack.c.b16 %v1456, %v1452
  %v1513 = vpack.c.b16 %v1461, %v1457
  %v1514 = vpack.c.b16 %v1462, %v1458
  %v1515 = vpack.c.b16 %v1463, %v1459
  %v1516 = vpack.c.b16 %v1464, %v1460
  %v1517 = vpack.c.b16 %v1469, %v1465
  %v1518 = vpack.c.b16 %v1470, %v1466
  %v1519 = vpack.c.b16 %v1471, %v1467
  %v1520 = vpack.c.b16 %v1472, %v1468
  %v1521 = vpack.c.b16 %v1477, %v1473
  %v1522 = vpack.c.b16 %v1478, %v1474
  %v1523 = vpack.c.b16 %v1479, %v1475
  %v1524 = vpack.c.b16 %v1480, %v1476
  %v1525 = vpack.c.b16 %v1485, %v1481
  %v1526 = vpack.c.b16 %v1486, %v1482
  %v1527 = vpack.c.b16 %v1487, %v1483
  %v1528 = vpack.c.b16 %v1488, %v1484
  %v1529 = vpack.c.b16 %v1493, %v1489
  %v1530 = vpack.c.b16 %v1494, %v1490
  %v1531 = vpack.c.b16 %v1495, %v1491
  %v1532 = vpack.c.b16 %v1496, %v1492
  %v1570 = vsel %vm690, %v1387, 0
  %1572 = vmatpush.bf16.msra.mxu0 %v1525
  %1573 = vmatpush.bf16.msra.mxu0 %v1521
  %1574 = vmatpush.bf16.msra.mxu0 %v1517
  %1575 = vmatpush.bf16.msra.mxu0 %v1513
  %1576 = vmatpush.bf16.msra.mxu0 %v1509
  %1577 = vmatpush.bf16.msra.mxu0 %v1505
  %1578 = vmatpush.bf16.msra.mxu0 %v1501
  %1579 = vmatpush.bf16.msra.mxu0 %v1497
  %1580 = vmatmul.bf16.gmra.mxu0 %v1386
  %v1581 = vpop.f32.mrf.mxu0
  %v1582 = vadd.f32 0.0, %v1581
  %v1583 = vpop.f32.mrf.mxu0
  %v1584 = vadd.f32 0.0, %v1583
  %1585 = vdwg.mxu0
  %1586 = vmatpush.bf16.msra.mxu0 0
  %1587 = vmatpush.bf16.msra.mxu0 0
  %1588 = vmatpush.bf16.msra.mxu0 0
  %1589 = vmatpush.bf16.msra.mxu0 0
  %1590 = vmatpush.bf16.msra.mxu0 0
  %1591 = vmatpush.bf16.msra.mxu0 0
  %1592 = vmatpush.bf16.msra.mxu0 0
  %1593 = vmatpush.bf16.msra.mxu0 %v1529
  %1594 = vmatmul.bf16.gmra.mxu0 %v1570
  %v1595 = vpop.f32.mrf.mxu0
  %v1596 = vadd.f32 %v1582, %v1595
  %v1597 = vpop.f32.mrf.mxu0
  %v1598 = vadd.f32 %v1584, %v1597
  %1599 = vdwg.mxu0
  %1600 = vmatpush.bf16.msra.mxu0 %v1526
  %1601 = vmatpush.bf16.msra.mxu0 %v1522
  %1602 = vmatpush.bf16.msra.mxu0 %v1518
  %1603 = vmatpush.bf16.msra.mxu0 %v1514
  %1604 = vmatpush.bf16.msra.mxu0 %v1510
  %1605 = vmatpush.bf16.msra.mxu0 %v1506
  %1606 = vmatpush.bf16.msra.mxu0 %v1502
  %1607 = vmatpush.bf16.msra.mxu0 %v1498
  %1608 = vmatmul.bf16.gmra.mxu0 %v1386
  %v1609 = vpop.f32.mrf.mxu0
  %v1610 = vadd.f32 0.0, %v1609
  %v1611 = vpop.f32.mrf.mxu0
  %v1612 = vadd.f32 0.0, %v1611
  %1613 = vdwg.mxu0
  %1614 = vmatpush.bf16.msra.mxu0 0
  %1615 = vmatpush.bf16.msra.mxu0 0
  %1616 = vmatpush.bf16.msra.mxu0 0
  %1617 = vmatpush.bf16.msra.mxu0 0
  %1618 = vmatpush.bf16.msra.mxu0 0
  %1619 = vmatpush.bf16.msra.mxu0 0
  %1620 = vmatpush.bf16.msra.mxu0 0
  %1621 = vmatpush.bf16.msra.mxu0 %v1530
  %1622 = vmatmul.bf16.gmra.mxu0 %v1570
  %v1623 = vpop.f32.mrf.mxu0
  %v1624 = vadd.f32 %v1610, %v1623
  %v1625 = vpop.f32.mrf.mxu0
  %v1626 = vadd.f32 %v1612, %v1625
  %1627 = vdwg.mxu0
  %1628 = vmatpush.bf16.msra.mxu0 %v1527
  %1629 = vmatpush.bf16.msra.mxu0 %v1523
  %1630 = vmatpush.bf16.msra.mxu0 %v1519
  %1631 = vmatpush.bf16.msra.mxu0 %v1515
  %1632 = vmatpush.bf16.msra.mxu0 %v1511
  %1633 = vmatpush.bf16.msra.mxu0 %v1507
  %1634 = vmatpush.bf16.msra.mxu0 %v1503
  %1635 = vmatpush.bf16.msra.mxu0 %v1499
  %1636 = vmatmul.bf16.gmra.mxu0 %v1386
  %v1637 = vpop.f32.mrf.mxu0
  %v1638 = vadd.f32 0.0, %v1637
  %v1639 = vpop.f32.mrf.mxu0
  %v1640 = vadd.f32 0.0, %v1639
  %1641 = vdwg.mxu0
  %1642 = vmatpush.bf16.msra.mxu0 0
  %1643 = vmatpush.bf16.msra.mxu0 0
  %1644 = vmatpush.bf16.msra.mxu0 0
  %1645 = vmatpush.bf16.msra.mxu0 0
  %1646 = vmatpush.bf16.msra.mxu0 0
  %1647 = vmatpush.bf16.msra.mxu0 0
  %1648 = vmatpush.bf16.msra.mxu0 0
  %1649 = vmatpush.bf16.msra.mxu0 %v1531
  %1650 = vmatmul.bf16.gmra.mxu0 %v1570
  %v1651 = vpop.f32.mrf.mxu0
  %v1652 = vadd.f32 %v1638, %v1651
  %v1653 = vpop.f32.mrf.mxu0
  %v1654 = vadd.f32 %v1640, %v1653
  %1655 = vdwg.mxu0
  %1656 = vmatpush.bf16.msra.mxu0 %v1528
  %1657 = vmatpush.bf16.msra.mxu0 %v1524
  %1658 = vmatpush.bf16.msra.mxu0 %v1520
  %1659 = vmatpush.bf16.msra.mxu0 %v1516
  %1660 = vmatpush.bf16.msra.mxu0 %v1512
  %1661 = vmatpush.bf16.msra.mxu0 %v1508
  %1662 = vmatpush.bf16.msra.mxu0 %v1504
  %1663 = vmatpush.bf16.msra.mxu0 %v1500
  %1664 = vmatmul.bf16.gmra.mxu0 %v1386
  %v1665 = vpop.f32.mrf.mxu0
  %v1666 = vadd.f32 0.0, %v1665
  %v1667 = vpop.f32.mrf.mxu0
  %v1668 = vadd.f32 0.0, %v1667
  %1669 = vdwg.mxu0
  %1670 = vmatpush.bf16.msra.mxu0 0
  %1671 = vmatpush.bf16.msra.mxu0 0
  %1672 = vmatpush.bf16.msra.mxu0 0
  %1673 = vmatpush.bf16.msra.mxu0 0
  %1674 = vmatpush.bf16.msra.mxu0 0
  %1675 = vmatpush.bf16.msra.mxu0 0
  %1676 = vmatpush.bf16.msra.mxu0 0
  %1677 = vmatpush.bf16.msra.mxu0 %v1532
  %1678 = vmatmul.bf16.gmra.mxu0 %v1570
  %v1679 = vpop.f32.mrf.mxu0
  %v1680 = vadd.f32 %v1666, %v1679
  %v1681 = vpop.f32.mrf.mxu0
  %v1682 = vadd.f32 %v1668, %v1681
  %1683 = vdwg.mxu0
  %v1684 = vld [vmem:[%s6] sm:$0xff]
  %v1685 = vld [vmem:[%s6 + $0x8] sm:$0xff]
  %v1686 = vld [vmem:[%s7] sm:$0xff]
  %v1687 = vld [vmem:[%s7 + $0x8] sm:$0xff]
  %v1688 = vadd.f32 %v1596, %v1624
  %v1689 = vadd.f32 %v1688, %v1652
  %v1690 = vadd.f32 %v1689, %v1680
  %1691 = vadd.xlane.f32.xlu0 %v1690
  %v1692 = vpop.xlane.xlu0 %1691
  %v1693 = vadd.f32 %v1598, %v1626
  %v1694 = vadd.f32 %v1693, %v1654
  %v1695 = vadd.f32 %v1694, %v1682
  %1696 = vadd.xlane.f32.xlu0 %v1695
  %v1697 = vpop.xlane.xlu0 %1696
  %v1698 = vmul.f32 %v1596, %v1596
  %v1699 = vmul.f32 %v1624, %v1624
  %v1700 = vmul.f32 %v1652, %v1652
  %v1701 = vmul.f32 %v1680, %v1680
  %v1702 = vmul.f32 %v1598, %v1598
  %v1703 = vmul.f32 %v1626, %v1626
  %v1704 = vmul.f32 %v1654, %v1654
  %v1705 = vmul.f32 %v1682, %v1682
  %v1706 = vadd.f32 %v1698, %v1699
  %v1707 = vadd.f32 %v1706, %v1700
  %v1708 = vadd.f32 %v1707, %v1701
  %1709 = vadd.xlane.f32.xlu0 %v1708
  %v1710 = vpop.xlane.xlu0 %1709
  %v1711 = vadd.f32 %v1702, %v1703
  %v1712 = vadd.f32 %v1711, %v1704
  %v1713 = vadd.f32 %v1712, %v1705
  %1714 = vadd.xlane.f32.xlu0 %v1713
  %v1715 = vpop.xlane.xlu0 %1714
  %v1716 = vmul.f32 %v1692, 0.001953125
  %v1717 = vmul.f32 %v1697, 0.001953125
  %v1718 = vmul.f32 %v1710, 0.001953125
  %v1719 = vmul.f32 %v1715, 0.001953125
  %v1720 = vmul.f32 %v1716, %v1716
  %v1721 = vmul.f32 %v1717, %v1717
  %v1722 = vsub.f32 %v1718, %v1720
  %v1723 = vsub.f32 %v1719, %v1721
  %v1724 = vadd.f32 %v1722, 1e-05
  %v1725 = vadd.f32 %v1723, 1e-05
  %v1726 = vrsqrt.pop %v1724
  %v1727 = vmul.f32 %v1726, %v1724
  %v1728 = vmul.f32 %v1727, %v1726
  %v1729 = vmul.f32 0.5, %v1728
  %v1730 = vsub.f32 1.5, %v1729
  %v1731 = vmul.f32 %v1726, %v1730
  %vm1732 = vweird.f32 %v1724
  %vm1733 = vweird.f32 %v1726
  %vm1734 = vmor %vm1732, %vm1733
  %v1735 = vsel %vm1734, %v1726, %v1731
  %v1736 = vrsqrt.pop %v1725
  %v1737 = vmul.f32 %v1736, %v1725
  %v1738 = vmul.f32 %v1737, %v1736
  %v1739 = vmul.f32 0.5, %v1738
  %v1740 = vsub.f32 1.5, %v1739
  %v1741 = vmul.f32 %v1736, %v1740
  %vm1742 = vweird.f32 %v1725
  %vm1743 = vweird.f32 %v1736
  %vm1744 = vmor %vm1742, %vm1743
  %v1745 = vsel %vm1744, %v1736, %v1741
  %v1746 = vmul.f32 %v1684, %v1735
  %v1747 = vmul.f32 %v1685, %v1745
  %v1748 = vmul.f32 %v1716, %v1746
  %v1749 = vmul.f32 %v1717, %v1747
  %v1750 = vsub.f32 %v1686, %v1748
  %v1751 = vsub.f32 %v1687, %v1749
  %1753 = vset.pattern.permute.xlu0 0
  %1754 = vperm.xlu0 %1753, %v1746
  %v1755 = vpop.permute.xlu0 %1754
  %1758 = vset.pattern.permute.xlu0 0
  %1759 = vperm.xlu0 %1758, %v1747
  %v1760 = vpop.permute.xlu0 %1759
  %v1762 = vmul.f32 %v1596, %v1755
  %v1763 = vmul.f32 %v1624, %v1755
  %v1764 = vmul.f32 %v1652, %v1755
  %v1765 = vmul.f32 %v1680, %v1755
  %v1766 = vmul.f32 %v1598, %v1760
  %v1767 = vmul.f32 %v1626, %v1760
  %v1768 = vmul.f32 %v1654, %v1760
  %v1769 = vmul.f32 %v1682, %v1760
  %1771 = vset.pattern.permute.xlu0 0
  %1772 = vperm.xlu0 %1771, %v1750
  %v1773 = vpop.permute.xlu0 %1772
  %1776 = vset.pattern.permute.xlu0 0
  %1777 = vperm.xlu0 %1776, %v1751
  %v1778 = vpop.permute.xlu0 %1777
  %v1780 = vadd.f32 %v1762, %v1773
  %v1781 = vadd.f32 %v1763, %v1773
  %v1782 = vadd.f32 %v1764, %v1773
  %v1783 = vadd.f32 %v1765, %v1773
  %v1784 = vadd.f32 %v1766, %v1778
  %v1785 = vadd.f32 %v1767, %v1778
  %v1786 = vadd.f32 %v1768, %v1778
  %v1787 = vadd.f32 %v1769, %v1778
  %v1788 = vld [vmem:[%s0] sm:$0xff]
  %v1789 = vld [vmem:[%s0 + $0x8] sm:$0xff]
  %v1790 = vld [vmem:[%s0 + $0x10] sm:$0xff]
  %v1791 = vld [vmem:[%s0 + $0x18] sm:$0xff]
  %v1792 = vld [vmem:[%s0 + $0x20] sm:$0xff]
  %v1793 = vld [vmem:[%s0 + $0x28] sm:$0xff]
  %v1794 = vld [vmem:[%s0 + $0x30] sm:$0xff]
  %v1795 = vld [vmem:[%s0 + $0x38] sm:$0xff]
  %v1796 = vadd.f32 %v1780, %v1788
  %v1797 = vadd.f32 %v1781, %v1789
  %v1798 = vadd.f32 %v1782, %v1790
  %v1799 = vadd.f32 %v1783, %v1791
  %v1800 = vadd.f32 %v1784, %v1792
  %v1801 = vadd.f32 %v1785, %v1793
  %v1802 = vadd.f32 %v1786, %v1794
  %v1803 = vadd.f32 %v1787, %v1795
  %v1804 = vmax.f32 %v1796, 0.0
  %v1805 = vmax.f32 %v1797, 0.0
  %v1806 = vmax.f32 %v1798, 0.0
  %v1807 = vmax.f32 %v1799, 0.0
  %v1808 = vmax.f32 %v1800, 0.0
  %v1809 = vmax.f32 %v1801, 0.0
  %v1810 = vmax.f32 %v1802, 0.0
  %v1811 = vmax.f32 %v1803, 0.0
  %1812 = vst [vmem:[%s8] sm:$0xff] %v1804
  %1813 = vst [vmem:[%s8 + $0x8] sm:$0xff] %v1805
  %1814 = vst [vmem:[%s8 + $0x10] sm:$0xff] %v1806
  %1815 = vst [vmem:[%s8 + $0x18] sm:$0xff] %v1807
  %1816 = vst [vmem:[%s8 + $0x20] sm:$0xff] %v1808
  %1817 = vst [vmem:[%s8 + $0x28] sm:$0xff] %v1809
  %1818 = vst [vmem:[%s8 + $0x30] sm:$0xff] %v1810
  %1819 = vst [vmem:[%s8 + $0x38] sm:$0xff] %v1811
  // Predicated region
  $region34: #{resnet_block_forward.1} parent=0 // pred_check
    _
  $region35: #{resnet_block_forward.1} parent=0 // pred_check_branch
    %1821 = sbr.rel (0) target = $region37
  $region36: #{resnet_block_forward.1} parent=0 // pred_region
    _
  $region37: #{resnet_block_forward.1} parent=0 // pred_fallthru
    _
  // Predicated region
  $region38: #{resnet_block_forward.1} parent=0 // pred_check
    _
  $region39: #{resnet_block_forward.1} parent=0 // pred_check_branch
    %1823 = sbr.rel (0) target = $region41
  $region40: #{resnet_block_forward.1} parent=0 // pred_region
    _
  $region41: #{resnet_block_forward.1} parent=0 // pred_fallthru
    _

</llo_original>
